<compile_context>
chip_gen: v6e
topology: v6e:2x2x1
jax: 0.10.0
libtpu: 0.0.40
codegen_flags: <defaults>
</compile_context>

<pallas_src>
import functools
import math

import jax
import jax.numpy as jnp
from jax.experimental import pallas as pl
from jax.experimental.pallas import tpu as pltpu

BN_EPS = 1e-5
_VMEM_LIMIT_BYTES = 48 * 1024 * 1024  # safe on v5e/v6e (128 MiB) and v7x (64 MiB)


def _round_up(x, m):
    return ((x + m - 1) // m) * m


def _activation_dtype():
    """bf16 inter-layer activations on v6e/v7x (bf16 VPU); f32 elsewhere (v5e)."""
    try:
        kind = jax.devices()[0].device_kind.lower()
    except Exception:
        kind = ""
    if ("v6" in kind) or ("v7" in kind):
        return jnp.bfloat16
    return jnp.float32


def _const_index_map(ndim):
    return {2: (lambda i: (0, 0)), 3: (lambda i: (0, 0, 0))}[ndim]


# ------------------------------- fused kernel -------------------------------

def _mlp_fused_kernel(x_ref, wf_ref, wm_ref, wl_ref, b_ref, out_ref, *,
                      hidden, num_mid, act_dtype):
    """Whole-network forward for one batch tile.

    x_ref:  [TM, Fin_pad] f32 (streamed)
    wf_ref: [Fin_pad, H] bf16   (resident)
    wm_ref: [num_mid, H, H] bf16 (resident)
    wl_ref: [H, C_pad] bf16      (resident)
    b_ref:  [num_layers, max(H, C_pad)] f32 (resident, folded Linear+BN biases)
    """
    w_dtype = wf_ref.dtype

    # Layer 0: [TM, Fin_pad] @ [Fin_pad, H] on the MXU, f32 accumulate.
    h = x_ref[...].astype(w_dtype)
    acc = jnp.dot(h, wf_ref[...], preferred_element_type=jnp.float32)
    h = jnp.maximum(acc + b_ref[0:1, :hidden], 0.0).astype(act_dtype)

    # Middle layers (static unroll): [TM, H] @ [H, H].
    for j in range(num_mid):
        acc = jnp.dot(h.astype(w_dtype), wm_ref[j],
                      preferred_element_type=jnp.float32)
        h = jnp.maximum(acc + b_ref[j + 1:j + 2, :hidden], 0.0).astype(act_dtype)

    # Final classifier layer: no ReLU, f32 (lane-padded) output.
    c_pad = out_ref.shape[-1]
    acc = jnp.dot(h.astype(w_dtype), wl_ref[...],
                  preferred_element_type=jnp.float32)
    out_ref[...] = (acc + b_ref[num_mid + 1:num_mid + 2, :c_pad]).astype(out_ref.dtype)


# --------------------------------- wrapper ----------------------------------

def mlpnet_forward(x, params, num_classes, *, tile_m=512):
    """x: [N, F_in] f32.  params: list of (w [Fin,Fout] bf16, b [1,Fout] f32, relu)."""
    n, f_in = x.shape
    num_layers = len(params)
    assert num_layers >= 3
    hidden = params[0][0].shape[1]
    f_in_pad = params[0][0].shape[0]
    c_pad = params[-1][0].shape[1]
    num_mid = num_layers - 2
    for (w, _, _) in params[1:-1]:
        assert w.shape == (hidden, hidden), "middle layers must be square"
    relu_flags = tuple(r for (_, _, r) in params)
    assert relu_flags == (True,) * (num_layers - 1) + (False,)

    # ---- pack params: 3 weight slabs + 1 bias slab (21 refs -> 5 refs) ----
    w_first = params[0][0]
    w_mid = jnp.stack([params[i][0] for i in range(1, num_layers - 1)])
    w_last = params[-1][0]
    w_max = max(hidden, c_pad)
    b_all = jnp.zeros((num_layers, w_max), jnp.float32)
    for i, (_, b, _) in enumerate(params):
        b_all = b_all.at[i, : b.shape[1]].set(b[0])

    # ---- batch tiling: large tiles amortize per-step overhead; keep a 256
    # tile for moderate batches so v7x's two TensorCores both get work ----
    if n >= 2 * tile_m:
        tm = tile_m
    elif n > 256:
        tm = 256
    else:
        tm = max(8, _round_up(n, 8))
    n_pad = _round_up(n, tm)

    # ---- pad input rows to the tile and feature columns to the first
    # weight's lane-padded Fin (lane-dense x DMA, aligned first matmul K) ----
    x_p = jnp.pad(x, ((0, n_pad - n), (0, f_in_pad - f_in)))

    # ---- VMEM budget guard (weights must fit fully resident) ----
    itemsize = w_first.dtype.itemsize
    wbytes = (w_first.size + w_mid.size + w_last.size) * itemsize
    resident = 2 * wbytes + 2 * b_all.nbytes               # worst case: double-buffered
    stream = 2 * (tm * f_in_pad + tm * c_pad) * 4          # x / out tiles, double-buffered
    act = 3 * tm * max(hidden, c_pad, f_in_pad) * 4        # live h / acc headroom
    if resident + stream + act > _VMEM_LIMIT_BYTES - 4 * 1024 * 1024:
        # TODO(synk): stream weights over an 'arbitrary' layer grid axis when
        # they don't fit in VMEM (needed for num_hidden >= ~2048 on v7x).
        raise NotImplementedError("weights too large to stay VMEM-resident")

    total_mac = f_in_pad * hidden + num_mid * hidden * hidden + hidden * c_pad
    cost = pl.CostEstimate(
        flops=int(2 * n_pad * total_mac),
        transcendentals=0,
        bytes_accessed=int(x_p.nbytes + wbytes + b_all.nbytes + n_pad * c_pad * 4),
    )

    kernel = functools.partial(_mlp_fused_kernel, hidden=hidden,
                               num_mid=num_mid, act_dtype=_activation_dtype())

    def build(single_buffer_weights):
        def resident_spec(shape):
            if single_buffer_weights:
                # Constant index_map -> one VMEM buffer is enough; no point
                # double-buffering the resident weights/biases.
                return pl.BlockSpec(shape, _const_index_map(len(shape)),
                                    pipeline_mode=pl.Buffered(1))
            return pl.BlockSpec(shape, _const_index_map(len(shape)))

        return pl.pallas_call(
            kernel,
            out_shape=jax.ShapeDtypeStruct((n_pad, c_pad), jnp.float32),
            grid=(n_pad // tm,),
            in_specs=[
                pl.BlockSpec((tm, f_in_pad), lambda i: (i, 0)),   # streamed x tile
                resident_spec(w_first.shape),
                resident_spec(w_mid.shape),
                resident_spec(w_last.shape),
                resident_spec(b_all.shape),
            ],
            out_specs=pl.BlockSpec((tm, c_pad), lambda i: (i, 0)),  # lane-dense out
            compiler_params=pltpu.CompilerParams(
                dimension_semantics=("parallel",),
                vmem_limit_bytes=_VMEM_LIMIT_BYTES,
            ),
            cost_estimate=cost,
        )

    args = (x_p, w_first, w_mid, w_last, b_all)
    try:
        out = build(True)(*args)     # weights single-buffered
    except Exception:
        out = build(False)(*args)    # fallback: default double-buffering
    return out[:n, :num_classes]


# ----------------------------- parameter setup -----------------------------

def _kaiming_uniform(key, fan_in, fan_out):
    # kaiming_uniform_ with default a=0: bound = sqrt(6 / fan_in)
    bound = math.sqrt(6.0 / fan_in)
    return jax.random.uniform(key, (fan_in, fan_out), jnp.float32, -bound, bound)


def _bias_uniform(key, fan_in, fan_out):
    bound = 1.0 / math.sqrt(fan_in) if fan_in > 0 else 0.0
    return jax.random.uniform(key, (fan_out,), jnp.float32, -bound, bound)


def init_mlpnet_params(key, num_features, num_classes, num_hidden=512,
                       weight_dtype=jnp.bfloat16):
    """Synthetic parameters matching MLPNet's shapes, BN folded into W/b."""
    f_in_pad = _round_up(num_features, 128)   # lane-dense input / aligned first K
    c_pad = _round_up(num_classes, 128)       # lane-dense output stores

    # 10 Linear layers total: 8 encoder (Linear+BN+ReLU), classifier hidden
    # (Linear+BN+ReLU), classifier output (Linear).
    layer_dims = ([(num_features, num_hidden)]
                  + [(num_hidden, num_hidden)] * 7
                  + [(num_hidden, num_hidden)])

    params = []
    for idx, (fin, fout) in enumerate(layer_dims):
        key, kw, kb, kg, kbeta = jax.random.split(key, 5)
        w = _kaiming_uniform(kw, fin, fout)
        b = _bias_uniform(kb, fin, fout)
        # BatchNorm1d (inference): gamma, beta, running_mean=0, running_var=1
        gamma = 1.0 + 0.01 * jax.random.normal(kg, (fout,), jnp.float32)
        beta = 0.01 * jax.random.normal(kbeta, (fout,), jnp.float32)
        run_mean = jnp.zeros((fout,), jnp.float32)
        run_var = jnp.ones((fout,), jnp.float32)
        inv_std = 1.0 / jnp.sqrt(run_var + BN_EPS)
        scale = gamma * inv_std
        shift = beta - run_mean * scale
        # Fold BN affine into the Linear:  (xW + b)*s + t == x(W*s) + (b*s + t)
        w_f = w * scale[None, :]
        b_f = (b * scale + shift).reshape(1, fout).astype(jnp.float32)
        if idx == 0 and f_in_pad != fin:
            w_f = jnp.pad(w_f, ((0, f_in_pad - fin), (0, 0)))  # rows meet zero x cols
        params.append((w_f.astype(weight_dtype), b_f, True))

    # Final classifier Linear (no BN, no ReLU), padded to 128-lane output width.
    key, kw, kb = jax.random.split(key, 3)
    w = _kaiming_uniform(kw, num_hidden, num_classes)
    b = _bias_uniform(kb, num_hidden, num_classes)
    w_p = jnp.zeros((num_hidden, c_pad), jnp.float32).at[:, :num_classes].set(w)
    b_p = jnp.zeros((1, c_pad), jnp.float32).at[:, :num_classes].set(b)
    params.append((w_p.astype(weight_dtype), b_p, False))
    return params


if __name__ == "__main__":
    num_features = 16
    num_classes = 10
    num_hidden = 32
    batch = 4

    key = jax.random.PRNGKey(0)
    key, kx = jax.random.split(key)
    x = jax.random.normal(kx, (batch, num_features), jnp.float32)

    params = init_mlpnet_params(key, num_features, num_classes, num_hidden)

    logits = mlpnet_forward(x, params, num_classes)
    logits = jax.block_until_ready(logits)
    assert logits.shape == (batch, num_classes), logits.shape
    print("KERNEL_OK")
</pallas_src>

<mosaic_0001>
module attributes {stable_mosaic.version = 11 : i64} {
  func.func @_mlp_fused_kernel(%arg0: i32, %arg1: memref<8x128xf32, #tpu.memory_space<vmem>>, %arg2: memref<128x32xbf16, #tpu.memory_space<vmem>>, %arg3: memref<8x32x32xbf16, #tpu.memory_space<vmem>>, %arg4: memref<32x128xbf16, #tpu.memory_space<vmem>>, %arg5: memref<10x128xf32, #tpu.memory_space<vmem>>, %arg6: memref<8x128xf32, #tpu.memory_space<vmem>>) attributes {dimension_semantics = [#tpu.dimension_semantics<parallel>], iteration_bounds = array<i64: 1>, scalar_prefetch = 0 : i64, scratch_operands = 0 : i64, tpu.core_type = #tpu.core_type<tc>, window_params = [{transform_indices = @transform_0, window_bounds = array<i64: 8, 128>}, {pipeline_mode = #tpu.pipeline_mode<synchronous>, transform_indices = @transform_1, window_bounds = array<i64: 128, 32>}, {pipeline_mode = #tpu.pipeline_mode<synchronous>, transform_indices = @transform_2, window_bounds = array<i64: 8, 32, 32>}, {pipeline_mode = #tpu.pipeline_mode<synchronous>, transform_indices = @transform_3, window_bounds = array<i64: 32, 128>}, {pipeline_mode = #tpu.pipeline_mode<synchronous>, transform_indices = @transform_4, window_bounds = array<i64: 10, 128>}, {transform_indices = @transform_5, window_bounds = array<i64: 8, 128>}]} {
    %c0 = arith.constant 0 : index
    %c0_0 = arith.constant 0 : index
    %0 = vector.load %arg1[%c0, %c0_0] : memref<8x128xf32, #tpu.memory_space<vmem>>, vector<8x128xf32>
    %1 = arith.truncf %0 : vector<8x128xf32> to vector<8x128xbf16>
    %c0_1 = arith.constant 0 : index
    %c0_2 = arith.constant 0 : index
    %2 = vector.load %arg2[%c0_1, %c0_2] : memref<128x32xbf16, #tpu.memory_space<vmem>>, vector<128x32xbf16>
    %cst = arith.constant dense<0.000000e+00> : vector<8x32xf32>
    %3 = tpu.matmul %1, %2, %cst {dimension_numbers = #tpu.dot_dimension_numbers<[1], [0], [0], [1], [0, 0, 1, 1], [], []>} : vector<8x128xbf16>, vector<128x32xbf16>, vector<8x32xf32> -> vector<8x32xf32>
    %c0_3 = arith.constant 0 : index
    %c0_4 = arith.constant 0 : index
    %4 = vector.load %arg5[%c0_3, %c0_4] : memref<10x128xf32, #tpu.memory_space<vmem>>, vector<1x32xf32>
    %5 = vector.broadcast %4 : vector<1x32xf32> to vector<8x32xf32>
    %6 = arith.addf %3, %5 : vector<8x32xf32>
    %cst_5 = arith.constant 0.000000e+00 : f32
    %7 = vector.broadcast %cst_5 : f32 to vector<8x32xf32>
    %8 = arith.maximumf %6, %7 : vector<8x32xf32>
    %9 = arith.truncf %8 : vector<8x32xf32> to vector<8x32xbf16>
    %c0_6 = arith.constant 0 : index
    %c0_7 = arith.constant 0 : index
    %c0_8 = arith.constant 0 : index
    %10 = vector.load %arg3[%c0_6, %c0_7, %c0_8] : memref<8x32x32xbf16, #tpu.memory_space<vmem>>, vector<1x32x32xbf16>
    %11 = vector.shape_cast %10 : vector<1x32x32xbf16> to vector<32x32xbf16>
    %cst_9 = arith.constant dense<0.000000e+00> : vector<8x32xf32>
    %12 = tpu.matmul %9, %11, %cst_9 {dimension_numbers = #tpu.dot_dimension_numbers<[1], [0], [0], [1], [0, 0, 1, 1], [], []>} : vector<8x32xbf16>, vector<32x32xbf16>, vector<8x32xf32> -> vector<8x32xf32>
    %c1 = arith.constant 1 : index
    %c0_10 = arith.constant 0 : index
    %13 = vector.load %arg5[%c1, %c0_10] : memref<10x128xf32, #tpu.memory_space<vmem>>, vector<1x32xf32>
    %14 = vector.broadcast %13 : vector<1x32xf32> to vector<8x32xf32>
    %15 = arith.addf %12, %14 : vector<8x32xf32>
    %cst_11 = arith.constant 0.000000e+00 : f32
    %16 = vector.broadcast %cst_11 : f32 to vector<8x32xf32>
    %17 = arith.maximumf %15, %16 : vector<8x32xf32>
    %18 = arith.truncf %17 : vector<8x32xf32> to vector<8x32xbf16>
    %c1_12 = arith.constant 1 : index
    %c0_13 = arith.constant 0 : index
    %c0_14 = arith.constant 0 : index
    %19 = vector.load %arg3[%c1_12, %c0_13, %c0_14] : memref<8x32x32xbf16, #tpu.memory_space<vmem>>, vector<1x32x32xbf16>
    %20 = vector.shape_cast %19 : vector<1x32x32xbf16> to vector<32x32xbf16>
    %cst_15 = arith.constant dense<0.000000e+00> : vector<8x32xf32>
    %21 = tpu.matmul %18, %20, %cst_15 {dimension_numbers = #tpu.dot_dimension_numbers<[1], [0], [0], [1], [0, 0, 1, 1], [], []>} : vector<8x32xbf16>, vector<32x32xbf16>, vector<8x32xf32> -> vector<8x32xf32>
    %c2 = arith.constant 2 : index
    %c0_16 = arith.constant 0 : index
    %22 = vector.load %arg5[%c2, %c0_16] : memref<10x128xf32, #tpu.memory_space<vmem>>, vector<1x32xf32>
    %23 = vector.broadcast %22 : vector<1x32xf32> to vector<8x32xf32>
    %24 = arith.addf %21, %23 : vector<8x32xf32>
    %cst_17 = arith.constant 0.000000e+00 : f32
    %25 = vector.broadcast %cst_17 : f32 to vector<8x32xf32>
    %26 = arith.maximumf %24, %25 : vector<8x32xf32>
    %27 = arith.truncf %26 : vector<8x32xf32> to vector<8x32xbf16>
    %c2_18 = arith.constant 2 : index
    %c0_19 = arith.constant 0 : index
    %c0_20 = arith.constant 0 : index
    %28 = vector.load %arg3[%c2_18, %c0_19, %c0_20] : memref<8x32x32xbf16, #tpu.memory_space<vmem>>, vector<1x32x32xbf16>
    %29 = vector.shape_cast %28 : vector<1x32x32xbf16> to vector<32x32xbf16>
    %cst_21 = arith.constant dense<0.000000e+00> : vector<8x32xf32>
    %30 = tpu.matmul %27, %29, %cst_21 {dimension_numbers = #tpu.dot_dimension_numbers<[1], [0], [0], [1], [0, 0, 1, 1], [], []>} : vector<8x32xbf16>, vector<32x32xbf16>, vector<8x32xf32> -> vector<8x32xf32>
    %c3 = arith.constant 3 : index
    %c0_22 = arith.constant 0 : index
    %31 = vector.load %arg5[%c3, %c0_22] : memref<10x128xf32, #tpu.memory_space<vmem>>, vector<1x32xf32>
    %32 = vector.broadcast %31 : vector<1x32xf32> to vector<8x32xf32>
    %33 = arith.addf %30, %32 : vector<8x32xf32>
    %cst_23 = arith.constant 0.000000e+00 : f32
    %34 = vector.broadcast %cst_23 : f32 to vector<8x32xf32>
    %35 = arith.maximumf %33, %34 : vector<8x32xf32>
    %36 = arith.truncf %35 : vector<8x32xf32> to vector<8x32xbf16>
    %c3_24 = arith.constant 3 : index
    %c0_25 = arith.constant 0 : index
    %c0_26 = arith.constant 0 : index
    %37 = vector.load %arg3[%c3_24, %c0_25, %c0_26] : memref<8x32x32xbf16, #tpu.memory_space<vmem>>, vector<1x32x32xbf16>
    %38 = vector.shape_cast %37 : vector<1x32x32xbf16> to vector<32x32xbf16>
    %cst_27 = arith.constant dense<0.000000e+00> : vector<8x32xf32>
    %39 = tpu.matmul %36, %38, %cst_27 {dimension_numbers = #tpu.dot_dimension_numbers<[1], [0], [0], [1], [0, 0, 1, 1], [], []>} : vector<8x32xbf16>, vector<32x32xbf16>, vector<8x32xf32> -> vector<8x32xf32>
    %c4 = arith.constant 4 : index
    %c0_28 = arith.constant 0 : index
    %40 = vector.load %arg5[%c4, %c0_28] : memref<10x128xf32, #tpu.memory_space<vmem>>, vector<1x32xf32>
    %41 = vector.broadcast %40 : vector<1x32xf32> to vector<8x32xf32>
    %42 = arith.addf %39, %41 : vector<8x32xf32>
    %cst_29 = arith.constant 0.000000e+00 : f32
    %43 = vector.broadcast %cst_29 : f32 to vector<8x32xf32>
    %44 = arith.maximumf %42, %43 : vector<8x32xf32>
    %45 = arith.truncf %44 : vector<8x32xf32> to vector<8x32xbf16>
    %c4_30 = arith.constant 4 : index
    %c0_31 = arith.constant 0 : index
    %c0_32 = arith.constant 0 : index
    %46 = vector.load %arg3[%c4_30, %c0_31, %c0_32] : memref<8x32x32xbf16, #tpu.memory_space<vmem>>, vector<1x32x32xbf16>
    %47 = vector.shape_cast %46 : vector<1x32x32xbf16> to vector<32x32xbf16>
    %cst_33 = arith.constant dense<0.000000e+00> : vector<8x32xf32>
    %48 = tpu.matmul %45, %47, %cst_33 {dimension_numbers = #tpu.dot_dimension_numbers<[1], [0], [0], [1], [0, 0, 1, 1], [], []>} : vector<8x32xbf16>, vector<32x32xbf16>, vector<8x32xf32> -> vector<8x32xf32>
    %c5 = arith.constant 5 : index
    %c0_34 = arith.constant 0 : index
    %49 = vector.load %arg5[%c5, %c0_34] : memref<10x128xf32, #tpu.memory_space<vmem>>, vector<1x32xf32>
    %50 = vector.broadcast %49 : vector<1x32xf32> to vector<8x32xf32>
    %51 = arith.addf %48, %50 : vector<8x32xf32>
    %cst_35 = arith.constant 0.000000e+00 : f32
    %52 = vector.broadcast %cst_35 : f32 to vector<8x32xf32>
    %53 = arith.maximumf %51, %52 : vector<8x32xf32>
    %54 = arith.truncf %53 : vector<8x32xf32> to vector<8x32xbf16>
    %c5_36 = arith.constant 5 : index
    %c0_37 = arith.constant 0 : index
    %c0_38 = arith.constant 0 : index
    %55 = vector.load %arg3[%c5_36, %c0_37, %c0_38] : memref<8x32x32xbf16, #tpu.memory_space<vmem>>, vector<1x32x32xbf16>
    %56 = vector.shape_cast %55 : vector<1x32x32xbf16> to vector<32x32xbf16>
    %cst_39 = arith.constant dense<0.000000e+00> : vector<8x32xf32>
    %57 = tpu.matmul %54, %56, %cst_39 {dimension_numbers = #tpu.dot_dimension_numbers<[1], [0], [0], [1], [0, 0, 1, 1], [], []>} : vector<8x32xbf16>, vector<32x32xbf16>, vector<8x32xf32> -> vector<8x32xf32>
    %c6 = arith.constant 6 : index
    %c0_40 = arith.constant 0 : index
    %58 = vector.load %arg5[%c6, %c0_40] : memref<10x128xf32, #tpu.memory_space<vmem>>, vector<1x32xf32>
    %59 = vector.broadcast %58 : vector<1x32xf32> to vector<8x32xf32>
    %60 = arith.addf %57, %59 : vector<8x32xf32>
    %cst_41 = arith.constant 0.000000e+00 : f32
    %61 = vector.broadcast %cst_41 : f32 to vector<8x32xf32>
    %62 = arith.maximumf %60, %61 : vector<8x32xf32>
    %63 = arith.truncf %62 : vector<8x32xf32> to vector<8x32xbf16>
    %c6_42 = arith.constant 6 : index
    %c0_43 = arith.constant 0 : index
    %c0_44 = arith.constant 0 : index
    %64 = vector.load %arg3[%c6_42, %c0_43, %c0_44] : memref<8x32x32xbf16, #tpu.memory_space<vmem>>, vector<1x32x32xbf16>
    %65 = vector.shape_cast %64 : vector<1x32x32xbf16> to vector<32x32xbf16>
    %cst_45 = arith.constant dense<0.000000e+00> : vector<8x32xf32>
    %66 = tpu.matmul %63, %65, %cst_45 {dimension_numbers = #tpu.dot_dimension_numbers<[1], [0], [0], [1], [0, 0, 1, 1], [], []>} : vector<8x32xbf16>, vector<32x32xbf16>, vector<8x32xf32> -> vector<8x32xf32>
    %c7 = arith.constant 7 : index
    %c0_46 = arith.constant 0 : index
    %67 = vector.load %arg5[%c7, %c0_46] : memref<10x128xf32, #tpu.memory_space<vmem>>, vector<1x32xf32>
    %68 = vector.broadcast %67 : vector<1x32xf32> to vector<8x32xf32>
    %69 = arith.addf %66, %68 : vector<8x32xf32>
    %cst_47 = arith.constant 0.000000e+00 : f32
    %70 = vector.broadcast %cst_47 : f32 to vector<8x32xf32>
    %71 = arith.maximumf %69, %70 : vector<8x32xf32>
    %72 = arith.truncf %71 : vector<8x32xf32> to vector<8x32xbf16>
    %c7_48 = arith.constant 7 : index
    %c0_49 = arith.constant 0 : index
    %c0_50 = arith.constant 0 : index
    %73 = vector.load %arg3[%c7_48, %c0_49, %c0_50] : memref<8x32x32xbf16, #tpu.memory_space<vmem>>, vector<1x32x32xbf16>
    %74 = vector.shape_cast %73 : vector<1x32x32xbf16> to vector<32x32xbf16>
    %cst_51 = arith.constant dense<0.000000e+00> : vector<8x32xf32>
    %75 = tpu.matmul %72, %74, %cst_51 {dimension_numbers = #tpu.dot_dimension_numbers<[1], [0], [0], [1], [0, 0, 1, 1], [], []>} : vector<8x32xbf16>, vector<32x32xbf16>, vector<8x32xf32> -> vector<8x32xf32>
    %c8 = arith.constant 8 : index
    %c0_52 = arith.constant 0 : index
    %76 = vector.load %arg5[%c8, %c0_52] : memref<10x128xf32, #tpu.memory_space<vmem>>, vector<1x32xf32>
    %77 = vector.broadcast %76 : vector<1x32xf32> to vector<8x32xf32>
    %78 = arith.addf %75, %77 : vector<8x32xf32>
    %cst_53 = arith.constant 0.000000e+00 : f32
    %79 = vector.broadcast %cst_53 : f32 to vector<8x32xf32>
    %80 = arith.maximumf %78, %79 : vector<8x32xf32>
    %81 = arith.truncf %80 : vector<8x32xf32> to vector<8x32xbf16>
    %c0_54 = arith.constant 0 : index
    %c0_55 = arith.constant 0 : index
    %82 = vector.load %arg4[%c0_54, %c0_55] : memref<32x128xbf16, #tpu.memory_space<vmem>>, vector<32x128xbf16>
    %cst_56 = arith.constant dense<0.000000e+00> : vector<8x128xf32>
    %83 = tpu.matmul %81, %82, %cst_56 {dimension_numbers = #tpu.dot_dimension_numbers<[1], [0], [0], [1], [0, 0, 1, 1], [], []>} : vector<8x32xbf16>, vector<32x128xbf16>, vector<8x128xf32> -> vector<8x128xf32>
    %c9 = arith.constant 9 : index
    %c0_57 = arith.constant 0 : index
    %84 = vector.load %arg5[%c9, %c0_57] : memref<10x128xf32, #tpu.memory_space<vmem>>, vector<1x128xf32>
    %85 = vector.broadcast %84 : vector<1x128xf32> to vector<8x128xf32>
    %86 = arith.addf %83, %85 : vector<8x128xf32>
    %c0_58 = arith.constant 0 : index
    %c0_59 = arith.constant 0 : index
    %87 = vector.load %arg6[%c0_58, %c0_59] : memref<8x128xf32, #tpu.memory_space<vmem>>, vector<8x128xf32>
    tpu.vector_store %arg6[%c0_58, %c0_59], %86 {strides = array<i32>} : memref<8x128xf32, #tpu.memory_space<vmem>>, vector<8x128xf32>,
    return
  }
  func.func @transform_0(%arg0: i32) -> (i32, i32) {
    %c0_i32 = arith.constant 0 : i32
    %c0_i32_0 = arith.constant 0 : i32
    return %arg0, %c0_i32 : i32, i32
  }
  func.func @transform_1(%arg0: i32) -> (i32, i32) {
    %c0_i32 = arith.constant 0 : i32
    %c0_i32_0 = arith.constant 0 : i32
    %c0_i32_1 = arith.constant 0 : i32
    return %c0_i32, %c0_i32_0 : i32, i32
  }
  func.func @transform_2(%arg0: i32) -> (i32, i32, i32) {
    %c0_i32 = arith.constant 0 : i32
    %c0_i32_0 = arith.constant 0 : i32
    %c0_i32_1 = arith.constant 0 : i32
    %c0_i32_2 = arith.constant 0 : i32
    return %c0_i32, %c0_i32_0, %c0_i32_1 : i32, i32, i32
  }
  func.func @transform_3(%arg0: i32) -> (i32, i32) {
    %c0_i32 = arith.constant 0 : i32
    %c0_i32_0 = arith.constant 0 : i32
    %c0_i32_1 = arith.constant 0 : i32
    return %c0_i32, %c0_i32_0 : i32, i32
  }
  func.func @transform_4(%arg0: i32) -> (i32, i32) {
    %c0_i32 = arith.constant 0 : i32
    %c0_i32_0 = arith.constant 0 : i32
    %c0_i32_1 = arith.constant 0 : i32
    return %c0_i32, %c0_i32_0 : i32, i32
  }
  func.func @transform_5(%arg0: i32) -> (i32, i32) {
    %c0_i32 = arith.constant 0 : i32
    %c0_i32_0 = arith.constant 0 : i32
    return %arg0, %c0_i32 : i32, i32
  }
}

module attributes {stable_mosaic.version = 11 : i64} {
  func.func @_mlp_fused_kernel(%arg0: i32, %arg1: memref<8x128xf32, #tpu.memory_space<vmem>>, %arg2: memref<128x32xbf16, #tpu.memory_space<vmem>>, %arg3: memref<8x32x32xbf16, #tpu.memory_space<vmem>>, %arg4: memref<32x128xbf16, #tpu.memory_space<vmem>>, %arg5: memref<10x128xf32, #tpu.memory_space<vmem>>, %arg6: memref<8x128xf32, #tpu.memory_space<vmem>>) attributes {dimension_semantics = [#tpu.dimension_semantics<parallel>], iteration_bounds = array<i64: 1>, scalar_prefetch = 0 : i64, scratch_operands = 0 : i64, tpu.core_type = #tpu.core_type<tc>, window_params = [{transform_indices = @transform_0, window_bounds = array<i64: 8, 128>}, {pipeline_mode = #tpu.pipeline_mode<synchronous>, transform_indices = @transform_1, window_bounds = array<i64: 128, 32>}, {pipeline_mode = #tpu.pipeline_mode<synchronous>, transform_indices = @transform_2, window_bounds = array<i64: 8, 32, 32>}, {pipeline_mode = #tpu.pipeline_mode<synchronous>, transform_indices = @transform_3, window_bounds = array<i64: 32, 128>}, {pipeline_mode = #tpu.pipeline_mode<synchronous>, transform_indices = @transform_4, window_bounds = array<i64: 10, 128>}, {transform_indices = @transform_5, window_bounds = array<i64: 8, 128>}]} {
    %c0 = arith.constant 0 : index
    %c0_0 = arith.constant 0 : index
    %0 = vector.load %arg1[%c0, %c0_0] : memref<8x128xf32, #tpu.memory_space<vmem>>, vector<8x128xf32>
    %1 = arith.truncf %0 : vector<8x128xf32> to vector<8x128xbf16>
    %c0_1 = arith.constant 0 : index
    %c0_2 = arith.constant 0 : index
    %2 = vector.load %arg2[%c0_1, %c0_2] : memref<128x32xbf16, #tpu.memory_space<vmem>>, vector<128x32xbf16>
    %cst = arith.constant dense<0.000000e+00> : vector<8x32xf32>
    %3 = tpu.matmul %1, %2, %cst {dimension_numbers = #tpu.dot_dimension_numbers<[1], [0], [0], [1], [0, 0, 1, 1], [], []>} : vector<8x128xbf16>, vector<128x32xbf16>, vector<8x32xf32> -> vector<8x32xf32>
    %c0_3 = arith.constant 0 : index
    %c0_4 = arith.constant 0 : index
    %4 = vector.load %arg5[%c0_3, %c0_4] : memref<10x128xf32, #tpu.memory_space<vmem>>, vector<1x32xf32>
    %5 = vector.broadcast %4 : vector<1x32xf32> to vector<8x32xf32>
    %6 = arith.addf %3, %5 : vector<8x32xf32>
    %cst_5 = arith.constant 0.000000e+00 : f32
    %7 = vector.broadcast %cst_5 : f32 to vector<8x32xf32>
    %8 = arith.maximumf %6, %7 : vector<8x32xf32>
    %9 = arith.truncf %8 : vector<8x32xf32> to vector<8x32xbf16>
    %c0_6 = arith.constant 0 : index
    %c0_7 = arith.constant 0 : index
    %c0_8 = arith.constant 0 : index
    %10 = vector.load %arg3[%c0_6, %c0_7, %c0_8] : memref<8x32x32xbf16, #tpu.memory_space<vmem>>, vector<1x32x32xbf16>
    %11 = vector.shape_cast %10 : vector<1x32x32xbf16> to vector<32x32xbf16>
    %cst_9 = arith.constant dense<0.000000e+00> : vector<8x32xf32>
    %12 = tpu.matmul %9, %11, %cst_9 {dimension_numbers = #tpu.dot_dimension_numbers<[1], [0], [0], [1], [0, 0, 1, 1], [], []>} : vector<8x32xbf16>, vector<32x32xbf16>, vector<8x32xf32> -> vector<8x32xf32>
    %c1 = arith.constant 1 : index
    %c0_10 = arith.constant 0 : index
    %13 = vector.load %arg5[%c1, %c0_10] : memref<10x128xf32, #tpu.memory_space<vmem>>, vector<1x32xf32>
    %14 = vector.broadcast %13 : vector<1x32xf32> to vector<8x32xf32>
    %15 = arith.addf %12, %14 : vector<8x32xf32>
    %cst_11 = arith.constant 0.000000e+00 : f32
    %16 = vector.broadcast %cst_11 : f32 to vector<8x32xf32>
    %17 = arith.maximumf %15, %16 : vector<8x32xf32>
    %18 = arith.truncf %17 : vector<8x32xf32> to vector<8x32xbf16>
    %c1_12 = arith.constant 1 : index
    %c0_13 = arith.constant 0 : index
    %c0_14 = arith.constant 0 : index
    %19 = vector.load %arg3[%c1_12, %c0_13, %c0_14] : memref<8x32x32xbf16, #tpu.memory_space<vmem>>, vector<1x32x32xbf16>
    %20 = vector.shape_cast %19 : vector<1x32x32xbf16> to vector<32x32xbf16>
    %cst_15 = arith.constant dense<0.000000e+00> : vector<8x32xf32>
    %21 = tpu.matmul %18, %20, %cst_15 {dimension_numbers = #tpu.dot_dimension_numbers<[1], [0], [0], [1], [0, 0, 1, 1], [], []>} : vector<8x32xbf16>, vector<32x32xbf16>, vector<8x32xf32> -> vector<8x32xf32>
    %c2 = arith.constant 2 : index
    %c0_16 = arith.constant 0 : index
    %22 = vector.load %arg5[%c2, %c0_16] : memref<10x128xf32, #tpu.memory_space<vmem>>, vector<1x32xf32>
    %23 = vector.broadcast %22 : vector<1x32xf32> to vector<8x32xf32>
    %24 = arith.addf %21, %23 : vector<8x32xf32>
    %cst_17 = arith.constant 0.000000e+00 : f32
    %25 = vector.broadcast %cst_17 : f32 to vector<8x32xf32>
    %26 = arith.maximumf %24, %25 : vector<8x32xf32>
    %27 = arith.truncf %26 : vector<8x32xf32> to vector<8x32xbf16>
    %c2_18 = arith.constant 2 : index
    %c0_19 = arith.constant 0 : index
    %c0_20 = arith.constant 0 : index
    %28 = vector.load %arg3[%c2_18, %c0_19, %c0_20] : memref<8x32x32xbf16, #tpu.memory_space<vmem>>, vector<1x32x32xbf16>
    %29 = vector.shape_cast %28 : vector<1x32x32xbf16> to vector<32x32xbf16>
    %cst_21 = arith.constant dense<0.000000e+00> : vector<8x32xf32>
    %30 = tpu.matmul %27, %29, %cst_21 {dimension_numbers = #tpu.dot_dimension_numbers<[1], [0], [0], [1], [0, 0, 1, 1], [], []>} : vector<8x32xbf16>, vector<32x32xbf16>, vector<8x32xf32> -> vector<8x32xf32>
    %c3 = arith.constant 3 : index
    %c0_22 = arith.constant 0 : index
    %31 = vector.load %arg5[%c3, %c0_22] : memref<10x128xf32, #tpu.memory_space<vmem>>, vector<1x32xf32>
    %32 = vector.broadcast %31 : vector<1x32xf32> to vector<8x32xf32>
    %33 = arith.addf %30, %32 : vector<8x32xf32>
    %cst_23 = arith.constant 0.000000e+00 : f32
    %34 = vector.broadcast %cst_23 : f32 to vector<8x32xf32>
    %35 = arith.maximumf %33, %34 : vector<8x32xf32>
    %36 = arith.truncf %35 : vector<8x32xf32> to vector<8x32xbf16>
    %c3_24 = arith.constant 3 : index
    %c0_25 = arith.constant 0 : index
    %c0_26 = arith.constant 0 : index
    %37 = vector.load %arg3[%c3_24, %c0_25, %c0_26] : memref<8x32x32xbf16, #tpu.memory_space<vmem>>, vector<1x32x32xbf16>
    %38 = vector.shape_cast %37 : vector<1x32x32xbf16> to vector<32x32xbf16>
    %cst_27 = arith.constant dense<0.000000e+00> : vector<8x32xf32>
    %39 = tpu.matmul %36, %38, %cst_27 {dimension_numbers = #tpu.dot_dimension_numbers<[1], [0], [0], [1], [0, 0, 1, 1], [], []>} : vector<8x32xbf16>, vector<32x32xbf16>, vector<8x32xf32> -> vector<8x32xf32>
    %c4 = arith.constant 4 : index
    %c0_28 = arith.constant 0 : index
    %40 = vector.load %arg5[%c4, %c0_28] : memref<10x128xf32, #tpu.memory_space<vmem>>, vector<1x32xf32>
    %41 = vector.broadcast %40 : vector<1x32xf32> to vector<8x32xf32>
    %42 = arith.addf %39, %41 : vector<8x32xf32>
    %cst_29 = arith.constant 0.000000e+00 : f32
    %43 = vector.broadcast %cst_29 : f32 to vector<8x32xf32>
    %44 = arith.maximumf %42, %43 : vector<8x32xf32>
    %45 = arith.truncf %44 : vector<8x32xf32> to vector<8x32xbf16>
    %c4_30 = arith.constant 4 : index
    %c0_31 = arith.constant 0 : index
    %c0_32 = arith.constant 0 : index
    %46 = vector.load %arg3[%c4_30, %c0_31, %c0_32] : memref<8x32x32xbf16, #tpu.memory_space<vmem>>, vector<1x32x32xbf16>
    %47 = vector.shape_cast %46 : vector<1x32x32xbf16> to vector<32x32xbf16>
    %cst_33 = arith.constant dense<0.000000e+00> : vector<8x32xf32>
    %48 = tpu.matmul %45, %47, %cst_33 {dimension_numbers = #tpu.dot_dimension_numbers<[1], [0], [0], [1], [0, 0, 1, 1], [], []>} : vector<8x32xbf16>, vector<32x32xbf16>, vector<8x32xf32> -> vector<8x32xf32>
    %c5 = arith.constant 5 : index
    %c0_34 = arith.constant 0 : index
    %49 = vector.load %arg5[%c5, %c0_34] : memref<10x128xf32, #tpu.memory_space<vmem>>, vector<1x32xf32>
    %50 = vector.broadcast %49 : vector<1x32xf32> to vector<8x32xf32>
    %51 = arith.addf %48, %50 : vector<8x32xf32>
    %cst_35 = arith.constant 0.000000e+00 : f32
    %52 = vector.broadcast %cst_35 : f32 to vector<8x32xf32>
    %53 = arith.maximumf %51, %52 : vector<8x32xf32>
    %54 = arith.truncf %53 : vector<8x32xf32> to vector<8x32xbf16>
    %c5_36 = arith.constant 5 : index
    %c0_37 = arith.constant 0 : index
    %c0_38 = arith.constant 0 : index
    %55 = vector.load %arg3[%c5_36, %c0_37, %c0_38] : memref<8x32x32xbf16, #tpu.memory_space<vmem>>, vector<1x32x32xbf16>
    %56 = vector.shape_cast %55 : vector<1x32x32xbf16> to vector<32x32xbf16>
    %cst_39 = arith.constant dense<0.000000e+00> : vector<8x32xf32>
    %57 = tpu.matmul %54, %56, %cst_39 {dimension_numbers = #tpu.dot_dimension_numbers<[1], [0], [0], [1], [0, 0, 1, 1], [], []>} : vector<8x32xbf16>, vector<32x32xbf16>, vector<8x32xf32> -> vector<8x32xf32>
    %c6 = arith.constant 6 : index
    %c0_40 = arith.constant 0 : index
    %58 = vector.load %arg5[%c6, %c0_40] : memref<10x128xf32, #tpu.memory_space<vmem>>, vector<1x32xf32>
    %59 = vector.broadcast %58 : vector<1x32xf32> to vector<8x32xf32>
    %60 = arith.addf %57, %59 : vector<8x32xf32>
    %cst_41 = arith.constant 0.000000e+00 : f32
    %61 = vector.broadcast %cst_41 : f32 to vector<8x32xf32>
    %62 = arith.maximumf %60, %61 : vector<8x32xf32>
    %63 = arith.truncf %62 : vector<8x32xf32> to vector<8x32xbf16>
    %c6_42 = arith.constant 6 : index
    %c0_43 = arith.constant 0 : index
    %c0_44 = arith.constant 0 : index
    %64 = vector.load %arg3[%c6_42, %c0_43, %c0_44] : memref<8x32x32xbf16, #tpu.memory_space<vmem>>, vector<1x32x32xbf16>
    %65 = vector.shape_cast %64 : vector<1x32x32xbf16> to vector<32x32xbf16>
    %cst_45 = arith.constant dense<0.000000e+00> : vector<8x32xf32>
    %66 = tpu.matmul %63, %65, %cst_45 {dimension_numbers = #tpu.dot_dimension_numbers<[1], [0], [0], [1], [0, 0, 1, 1], [], []>} : vector<8x32xbf16>, vector<32x32xbf16>, vector<8x32xf32> -> vector<8x32xf32>
    %c7 = arith.constant 7 : index
    %c0_46 = arith.constant 0 : index
    %67 = vector.load %arg5[%c7, %c0_46] : memref<10x128xf32, #tpu.memory_space<vmem>>, vector<1x32xf32>
    %68 = vector.broadcast %67 : vector<1x32xf32> to vector<8x32xf32>
    %69 = arith.addf %66, %68 : vector<8x32xf32>
    %cst_47 = arith.constant 0.000000e+00 : f32
    %70 = vector.broadcast %cst_47 : f32 to vector<8x32xf32>
    %71 = arith.maximumf %69, %70 : vector<8x32xf32>
    %72 = arith.truncf %71 : vector<8x32xf32> to vector<8x32xbf16>
    %c7_48 = arith.constant 7 : index
    %c0_49 = arith.constant 0 : index
    %c0_50 = arith.constant 0 : index
    %73 = vector.load %arg3[%c7_48, %c0_49, %c0_50] : memref<8x32x32xbf16, #tpu.memory_space<vmem>>, vector<1x32x32xbf16>
    %74 = vector.shape_cast %73 : vector<1x32x32xbf16> to vector<32x32xbf16>
    %cst_51 = arith.constant dense<0.000000e+00> : vector<8x32xf32>
    %75 = tpu.matmul %72, %74, %cst_51 {dimension_numbers = #tpu.dot_dimension_numbers<[1], [0], [0], [1], [0, 0, 1, 1], [], []>} : vector<8x32xbf16>, vector<32x32xbf16>, vector<8x32xf32> -> vector<8x32xf32>
    %c8 = arith.constant 8 : index
    %c0_52 = arith.constant 0 : index
    %76 = vector.load %arg5[%c8, %c0_52] : memref<10x128xf32, #tpu.memory_space<vmem>>, vector<1x32xf32>
    %77 = vector.broadcast %76 : vector<1x32xf32> to vector<8x32xf32>
    %78 = arith.addf %75, %77 : vector<8x32xf32>
    %cst_53 = arith.constant 0.000000e+00 : f32
    %79 = vector.broadcast %cst_53 : f32 to vector<8x32xf32>
    %80 = arith.maximumf %78, %79 : vector<8x32xf32>
    %81 = arith.truncf %80 : vector<8x32xf32> to vector<8x32xbf16>
    %c0_54 = arith.constant 0 : index
    %c0_55 = arith.constant 0 : index
    %82 = vector.load %arg4[%c0_54, %c0_55] : memref<32x128xbf16, #tpu.memory_space<vmem>>, vector<32x128xbf16>
    %cst_56 = arith.constant dense<0.000000e+00> : vector<8x128xf32>
    %83 = tpu.matmul %81, %82, %cst_56 {dimension_numbers = #tpu.dot_dimension_numbers<[1], [0], [0], [1], [0, 0, 1, 1], [], []>} : vector<8x32xbf16>, vector<32x128xbf16>, vector<8x128xf32> -> vector<8x128xf32>
    %c9 = arith.constant 9 : index
    %c0_57 = arith.constant 0 : index
    %84 = vector.load %arg5[%c9, %c0_57] : memref<10x128xf32, #tpu.memory_space<vmem>>, vector<1x128xf32>
    %85 = vector.broadcast %84 : vector<1x128xf32> to vector<8x128xf32>
    %86 = arith.addf %83, %85 : vector<8x128xf32>
    %c0_58 = arith.constant 0 : index
    %c0_59 = arith.constant 0 : index
    %87 = vector.load %arg6[%c0_58, %c0_59] : memref<8x128xf32, #tpu.memory_space<vmem>>, vector<8x128xf32>
    tpu.vector_store %arg6[%c0_58, %c0_59], %86 {strides = array<i32>} : memref<8x128xf32, #tpu.memory_space<vmem>>, vector<8x128xf32>,
    return
  }
  func.func @transform_0(%arg0: i32) -> (i32, i32) {
    %c0_i32 = arith.constant 0 : i32
    %c0_i32_0 = arith.constant 0 : i32
    return %arg0, %c0_i32 : i32, i32
  }
  func.func @transform_1(%arg0: i32) -> (i32, i32) {
    %c0_i32 = arith.constant 0 : i32
    %c0_i32_0 = arith.constant 0 : i32
    %c0_i32_1 = arith.constant 0 : i32
    return %c0_i32, %c0_i32_0 : i32, i32
  }
  func.func @transform_2(%arg0: i32) -> (i32, i32, i32) {
    %c0_i32 = arith.constant 0 : i32
    %c0_i32_0 = arith.constant 0 : i32
    %c0_i32_1 = arith.constant 0 : i32
    %c0_i32_2 = arith.constant 0 : i32
    return %c0_i32, %c0_i32_0, %c0_i32_1 : i32, i32, i32
  }
  func.func @transform_3(%arg0: i32) -> (i32, i32) {
    %c0_i32 = arith.constant 0 : i32
    %c0_i32_0 = arith.constant 0 : i32
    %c0_i32_1 = arith.constant 0 : i32
    return %c0_i32, %c0_i32_0 : i32, i32
  }
  func.func @transform_4(%arg0: i32) -> (i32, i32) {
    %c0_i32 = arith.constant 0 : i32
    %c0_i32_0 = arith.constant 0 : i32
    %c0_i32_1 = arith.constant 0 : i32
    return %c0_i32, %c0_i32_0 : i32, i32
  }
  func.func @transform_5(%arg0: i32) -> (i32, i32) {
    %c0_i32 = arith.constant 0 : i32
    %c0_i32_0 = arith.constant 0 : i32
    return %arg0, %c0_i32 : i32, i32
  }
}

</mosaic_0001>

<llo_original>
// kernel: tpu_custom_call.1
$region0: #{tpu_custom_call.1}
  #allocation0 [shape = 'u32[]', space=smem, size = 0x4, offset = 0x4, fixed_abs, tag = 'smem constant byte address 0x4 - core index']
  #allocation1 [shape = 'u32[144,128]{1,0:T(1,128)}', space=vmem, size = 0x12000, scoped, tag = 'internal scratch']
  %s0 = inlined_call_operand.vmem [shape: f32[8,128], index: 0, kind: input, shape index: {}]
  %s1 = inlined_call_operand.vmem [shape: bf16[128,32], index: 1, kind: input, shape index: {}]
  %s2 = inlined_call_operand.hbm [shape: bf16[8,32,32], index: 2, kind: input, shape index: {}]
  %s3 = inlined_call_operand.vmem [shape: bf16[32,128], index: 3, kind: input, shape index: {}]
  %s4 = inlined_call_operand.vmem [shape: f32[10,128], index: 4, kind: input, shape index: {}]
  %s5 = inlined_call_operand.hbm [shape: f32[8,128], index: 5, kind: output, shape index: {}]
  %s6 = sld [smem:[#allocation0]]
  $region34: #{tpu_custom_call.1} parent=0
    _
  %s8 = ssub.s32 1, %s6
  %s9 = scalar_select 0, %s8, %s6
  $region1: #{tpu_custom_call.1} parent=0
    #allocation2 [shape = 'u8[65536]{0}', space=vmem, size = 0x10000, scoped, tag = 'input window, operand 2, single buffered']
    #allocation3 [shape = 's32[1]{0}', space=sflag, size = 0x4, scoped, tag = 'scoped memory for tpu_custom_call.1']
    #allocation4 [shape = 's32[1]{0}', space=sflag, size = 0x4, scoped, tag = 'scoped memory for tpu_custom_call.1']
    #allocation5 [shape = 'u8[4096]{0}', space=vmem, size = 0x1000, scoped, tag = 'output window, operand 0, single buffered']
    %10 = vsyncpa [#allocation3], 0
    %11 = vsyncpa [#allocation4], 0
    // Predicated region
    $region2: #{tpu_custom_call.1} parent=1 // pred_check
      _
    $region3: #{tpu_custom_call.1} parent=1 // pred_check_branch
      %13 = sbr.rel (0) target = $region5
    $region4: #{tpu_custom_call.1} parent=1 // pred_region
      _
    $region5: #{tpu_custom_call.1} parent=1 // pred_fallthru
      _
    // Predicated region
    $region6: #{tpu_custom_call.1} parent=1 // pred_check
      _
    $region7: #{tpu_custom_call.1} parent=1 // pred_check_branch
      %15 = sbr.rel (0) target = $region9
    $region8: #{tpu_custom_call.1} parent=1 // pred_region
      _
    $region9: #{tpu_custom_call.1} parent=1 // pred_fallthru
      _
    // Predicated region
    $region10: #{tpu_custom_call.1} parent=1 // pred_check
      _
    $region11: #{tpu_custom_call.1} parent=1 // pred_check_branch
      %17 = sbr.rel (0) target = $region13
    $region12: #{tpu_custom_call.1} parent=1 // pred_region
      %s19 = ssub.s32 2048, 2048
      %20 = vsyncadd [#allocation3], %s19
      %s21 = sshll.u32 [#allocation2], 4
      %s22 = int_to_ptr.vmem [resolvable:$true] %s21
      %27 = dma.hbm_to_vmem [thread:$0]  %s2, 2048, %s22, [#allocation3], 64, 64, 4
    $region13: #{tpu_custom_call.1} parent=1 // pred_fallthru
      _
    // Predicated region
    $region14: #{tpu_custom_call.1} parent=1 // pred_check
      _
    $region15: #{tpu_custom_call.1} parent=1 // pred_check_branch
      %29 = sbr.rel (0) target = $region17
    $region16: #{tpu_custom_call.1} parent=1 // pred_region
      _
    $region17: #{tpu_custom_call.1} parent=1 // pred_fallthru
      _
    // Predicated region
    $region18: #{tpu_custom_call.1} parent=1 // pred_check
      _
    $region19: #{tpu_custom_call.1} parent=1 // pred_check_branch
      %31 = sbr.rel (0) target = $region21
    $region20: #{tpu_custom_call.1} parent=1 // pred_region
      _
    $region21: #{tpu_custom_call.1} parent=1 // pred_fallthru
      _
    // Predicated region
    $region22: #{tpu_custom_call.1} parent=1 // pred_check
      _
    $region23: #{tpu_custom_call.1} parent=1 // pred_check_branch
      %33 = sbr.rel (0) target = $region25
    $region24: #{tpu_custom_call.1} parent=1 // pred_region
      %34 = dma.done [#allocation3], 2048
    $region25: #{tpu_custom_call.1} parent=1 // pred_fallthru
      _
    %v36 = vld [vmem:[%s0] sm:$0xff]
    %v37 = vpack.c.bf16 %v36, %v36
    %v38 = vld [vmem:[%s1] sm:$0xf]
    %v39 = vld [vmem:[%s1 + $0x4] sm:$0xf]
    %v40 = vld [vmem:[%s1 + $0x8] sm:$0xf]
    %v41 = vld [vmem:[%s1 + $0xc] sm:$0xf]
    %v42 = vld [vmem:[%s1 + $0x10] sm:$0xf]
    %v43 = vld [vmem:[%s1 + $0x14] sm:$0xf]
    %v44 = vld [vmem:[%s1 + $0x18] sm:$0xf]
    %v45 = vld [vmem:[%s1 + $0x1c] sm:$0xf]
    %v46 = vld [vmem:[%s1 + $0x20] sm:$0xf]
    %v47 = vld [vmem:[%s1 + $0x24] sm:$0xf]
    %v48 = vld [vmem:[%s1 + $0x28] sm:$0xf]
    %v49 = vld [vmem:[%s1 + $0x2c] sm:$0xf]
    %v50 = vld [vmem:[%s1 + $0x30] sm:$0xf]
    %v51 = vld [vmem:[%s1 + $0x34] sm:$0xf]
    %v52 = vld [vmem:[%s1 + $0x38] sm:$0xf]
    %v53 = vld [vmem:[%s1 + $0x3c] sm:$0xf]
    %v54 = vld [vmem:[%s4] sm:$0x1]
    %v55 = vlaneseq
    %v56 = vshrl.u32 %v55, 7
    %v57 = vsub.s32 0, %v56
    %v58 = vrot.slane %v54, %v57
    %v75 = vunpack.c.l.b16 %v38
    %v76 = vunpack.c.l.b16 %v39
    %v77 = vunpack.c.l.b16 %v40
    %v78 = vunpack.c.l.b16 %v41
    %v79 = vunpack.c.l.b16 %v42
    %v80 = vunpack.c.l.b16 %v43
    %v81 = vunpack.c.l.b16 %v44
    %v82 = vunpack.c.l.b16 %v45
    %v83 = vunpack.c.l.b16 %v46
    %v84 = vunpack.c.l.b16 %v47
    %v85 = vunpack.c.l.b16 %v48
    %v86 = vunpack.c.l.b16 %v49
    %v87 = vunpack.c.l.b16 %v50
    %v88 = vunpack.c.l.b16 %v51
    %v89 = vunpack.c.l.b16 %v52
    %v90 = vunpack.c.l.b16 %v53
    %v91 = vpack.c.b16 %v76, %v75
    %v92 = vpack.c.b16 %v78, %v77
    %v93 = vpack.c.b16 %v80, %v79
    %v94 = vpack.c.b16 %v82, %v81
    %v95 = vpack.c.b16 %v84, %v83
    %v96 = vpack.c.b16 %v86, %v85
    %v97 = vpack.c.b16 %v88, %v87
    %v98 = vpack.c.b16 %v90, %v89
    %107 = vmatprep.subr.bf16.mxu0 0
    %108 = vmatpush1.bf16.msra.mxu0 %v98
    %109 = vmatprep.subr.bf16.mxu0 0
    %110 = vmatpush1.bf16.msra.mxu0 %v97
    %111 = vmatprep.subr.bf16.mxu0 0
    %112 = vmatpush1.bf16.msra.mxu0 %v96
    %113 = vmatprep.subr.bf16.mxu0 0
    %114 = vmatpush1.bf16.msra.mxu0 %v95
    %115 = vmatprep.subr.bf16.mxu0 0
    %116 = vmatpush1.bf16.msra.mxu0 %v94
    %117 = vmatprep.subr.bf16.mxu0 0
    %118 = vmatpush1.bf16.msra.mxu0 %v93
    %119 = vmatprep.subr.bf16.mxu0 0
    %120 = vmatpush1.bf16.msra.mxu0 %v92
    %121 = vmatprep.subr.bf16.mxu0 0
    %122 = vmatpush1.bf16.msra.mxu0 %v91
    %123 = vmatprep.subr.bf16.mxu0 0
    %124 = vmatpush2.bf16.msra.mxu0 0
    %125 = vmatprep.subr.bf16.mxu0 0
    %126 = vmatpush2.bf16.msra.mxu0 0
    %127 = vmatprep.subr.bf16.mxu0 0
    %128 = vmatpush2.bf16.msra.mxu0 0
    %129 = vmatprep.subr.bf16.mxu0 0
    %130 = vmatpush2.bf16.msra.mxu0 0
    %131 = vmatprep.subr.bf16.mxu0 0
    %132 = vmatpush2.bf16.msra.mxu0 0
    %133 = vmatprep.subr.bf16.mxu0 0
    %134 = vmatpush2.bf16.msra.mxu0 0
    %135 = vmatprep.subr.bf16.mxu0 0
    %136 = vmatpush2.bf16.msra.mxu0 0
    %137 = vmatprep.subr.bf16.mxu0 0
    %138 = vmatpush2.bf16.msra.mxu0 0
    %139 = vmatprep.mubr.bf16.mxu0 0
    %140 = vmatmul.mubr.bf16.gmra.mxu0 %v37
    %v141 = vpop.f32.mrf.mxu0
    %v142 = vadd.f32 %v58, %v141
    %v143 = vpop.f32.mrf.mxu0
    %v144 = vpop.f32.mrf.mxu0
    %v145 = vpop.f32.mrf.mxu0
    %146 = vdwg.mxu0
    %v147 = vmax.f32 %v142, 0.0
    %v148 = vpack.c.bf16 %v147, %v147
    %v149 = vld [vmem:[#allocation2] sm:$0xf]
    %v150 = vld [vmem:[#allocation2 + $0x4] sm:$0xf]
    %v151 = vld [vmem:[#allocation2 + $0x8] sm:$0xf]
    %v152 = vld [vmem:[#allocation2 + $0xc] sm:$0xf]
    %v153 = vld [vmem:[%s4 + $0x1] sm:$0x1]
    %v154 = vlaneseq
    %v155 = vshrl.u32 %v154, 7
    %v156 = vsub.s32 0, %v155
    %v157 = vrot.slane %v153, %v156
    %v162 = vunpack.c.l.b16 %v149
    %v163 = vunpack.c.l.b16 %v150
    %v164 = vunpack.c.l.b16 %v151
    %v165 = vunpack.c.l.b16 %v152
    %v166 = vpack.c.b16 %v163, %v162
    %v167 = vpack.c.b16 %v165, %v164
    %vm170 = vcmask 261120
    %v172 = vsel %vm170, %v148, 0
    %174 = vmatprep.subr.bf16.mxu0 0
    %175 = vmatpush1.bf16.msra.mxu0 0
    %176 = vmatprep.subr.bf16.mxu0 0
    %177 = vmatpush1.bf16.msra.mxu0 0
    %178 = vmatprep.subr.bf16.mxu0 0
    %179 = vmatpush1.bf16.msra.mxu0 0
    %180 = vmatprep.subr.bf16.mxu0 0
    %181 = vmatpush1.bf16.msra.mxu0 0
    %182 = vmatprep.subr.bf16.mxu0 0
    %183 = vmatpush1.bf16.msra.mxu0 0
    %184 = vmatprep.subr.bf16.mxu0 0
    %185 = vmatpush1.bf16.msra.mxu0 0
    %186 = vmatprep.subr.bf16.mxu0 0
    %187 = vmatpush1.bf16.msra.mxu0 %v167
    %188 = vmatprep.subr.bf16.mxu0 0
    %189 = vmatpush1.bf16.msra.mxu0 %v166
    %190 = vmatprep.subr.bf16.mxu0 0
    %191 = vmatpush2.bf16.msra.mxu0 0
    %192 = vmatprep.subr.bf16.mxu0 0
    %193 = vmatpush2.bf16.msra.mxu0 0
    %194 = vmatprep.subr.bf16.mxu0 0
    %195 = vmatpush2.bf16.msra.mxu0 0
    %196 = vmatprep.subr.bf16.mxu0 0
    %197 = vmatpush2.bf16.msra.mxu0 0
    %198 = vmatprep.subr.bf16.mxu0 0
    %199 = vmatpush2.bf16.msra.mxu0 0
    %200 = vmatprep.subr.bf16.mxu0 0
    %201 = vmatpush2.bf16.msra.mxu0 0
    %202 = vmatprep.subr.bf16.mxu0 0
    %203 = vmatpush2.bf16.msra.mxu0 0
    %204 = vmatprep.subr.bf16.mxu0 0
    %205 = vmatpush2.bf16.msra.mxu0 0
    %206 = vmatprep.mubr.bf16.mxu0 0
    %207 = vmatmul.mubr.bf16.gmra.mxu0 %v172
    %v208 = vpop.f32.mrf.mxu0
    %v209 = vadd.f32 %v157, %v208
    %v210 = vpop.f32.mrf.mxu0
    %v211 = vpop.f32.mrf.mxu0
    %v212 = vpop.f32.mrf.mxu0
    %213 = vdwg.mxu0
    %v214 = vmax.f32 %v209, 0.0
    %v215 = vpack.c.bf16 %v214, %v214
    %s216 = scalar_lea.vmem [#allocation2], 16
    %v217 = vld [vmem:[%s216] sm:$0xf]
    %v218 = vld [vmem:[%s216 + $0x4] sm:$0xf]
    %v219 = vld [vmem:[%s216 + $0x8] sm:$0xf]
    %v220 = vld [vmem:[%s216 + $0xc] sm:$0xf]
    %v221 = vld [vmem:[%s4 + $0x2] sm:$0x1]
    %v222 = vlaneseq
    %v223 = vshrl.u32 %v222, 7
    %v224 = vsub.s32 0, %v223
    %v225 = vrot.slane %v221, %v224
    %v230 = vunpack.c.l.b16 %v217
    %v231 = vunpack.c.l.b16 %v218
    %v232 = vunpack.c.l.b16 %v219
    %v233 = vunpack.c.l.b16 %v220
    %v234 = vpack.c.b16 %v231, %v230
    %v235 = vpack.c.b16 %v233, %v232
    %v239 = vsel %vm170, %v215, 0
    %241 = vmatprep.subr.bf16.mxu0 0
    %242 = vmatpush1.bf16.msra.mxu0 0
    %243 = vmatprep.subr.bf16.mxu0 0
    %244 = vmatpush1.bf16.msra.mxu0 0
    %245 = vmatprep.subr.bf16.mxu0 0
    %246 = vmatpush1.bf16.msra.mxu0 0
    %247 = vmatprep.subr.bf16.mxu0 0
    %248 = vmatpush1.bf16.msra.mxu0 0
    %249 = vmatprep.subr.bf16.mxu0 0
    %250 = vmatpush1.bf16.msra.mxu0 0
    %251 = vmatprep.subr.bf16.mxu0 0
    %252 = vmatpush1.bf16.msra.mxu0 0
    %253 = vmatprep.subr.bf16.mxu0 0
    %254 = vmatpush1.bf16.msra.mxu0 %v235
    %255 = vmatprep.subr.bf16.mxu0 0
    %256 = vmatpush1.bf16.msra.mxu0 %v234
    %257 = vmatprep.subr.bf16.mxu0 0
    %258 = vmatpush2.bf16.msra.mxu0 0
    %259 = vmatprep.subr.bf16.mxu0 0
    %260 = vmatpush2.bf16.msra.mxu0 0
    %261 = vmatprep.subr.bf16.mxu0 0
    %262 = vmatpush2.bf16.msra.mxu0 0
    %263 = vmatprep.subr.bf16.mxu0 0
    %264 = vmatpush2.bf16.msra.mxu0 0
    %265 = vmatprep.subr.bf16.mxu0 0
    %266 = vmatpush2.bf16.msra.mxu0 0
    %267 = vmatprep.subr.bf16.mxu0 0
    %268 = vmatpush2.bf16.msra.mxu0 0
    %269 = vmatprep.subr.bf16.mxu0 0
    %270 = vmatpush2.bf16.msra.mxu0 0
    %271 = vmatprep.subr.bf16.mxu0 0
    %272 = vmatpush2.bf16.msra.mxu0 0
    %273 = vmatprep.mubr.bf16.mxu0 0
    %274 = vmatmul.mubr.bf16.gmra.mxu0 %v239
    %v275 = vpop.f32.mrf.mxu0
    %v276 = vadd.f32 %v225, %v275
    %v277 = vpop.f32.mrf.mxu0
    %v278 = vpop.f32.mrf.mxu0
    %v279 = vpop.f32.mrf.mxu0
    %280 = vdwg.mxu0
    %v281 = vmax.f32 %v276, 0.0
    %v282 = vpack.c.bf16 %v281, %v281
    %s283 = scalar_lea.vmem [#allocation2], 32
    %v284 = vld [vmem:[%s283] sm:$0xf]
    %v285 = vld [vmem:[%s283 + $0x4] sm:$0xf]
    %v286 = vld [vmem:[%s283 + $0x8] sm:$0xf]
    %v287 = vld [vmem:[%s283 + $0xc] sm:$0xf]
    %v288 = vld [vmem:[%s4 + $0x3] sm:$0x1]
    %v289 = vlaneseq
    %v290 = vshrl.u32 %v289, 7
    %v291 = vsub.s32 0, %v290
    %v292 = vrot.slane %v288, %v291
    %v297 = vunpack.c.l.b16 %v284
    %v298 = vunpack.c.l.b16 %v285
    %v299 = vunpack.c.l.b16 %v286
    %v300 = vunpack.c.l.b16 %v287
    %v301 = vpack.c.b16 %v298, %v297
    %v302 = vpack.c.b16 %v300, %v299
    %v306 = vsel %vm170, %v282, 0
    %308 = vmatprep.subr.bf16.mxu0 0
    %309 = vmatpush1.bf16.msra.mxu0 0
    %310 = vmatprep.subr.bf16.mxu0 0
    %311 = vmatpush1.bf16.msra.mxu0 0
    %312 = vmatprep.subr.bf16.mxu0 0
    %313 = vmatpush1.bf16.msra.mxu0 0
    %314 = vmatprep.subr.bf16.mxu0 0
    %315 = vmatpush1.bf16.msra.mxu0 0
    %316 = vmatprep.subr.bf16.mxu0 0
    %317 = vmatpush1.bf16.msra.mxu0 0
    %318 = vmatprep.subr.bf16.mxu0 0
    %319 = vmatpush1.bf16.msra.mxu0 0
    %320 = vmatprep.subr.bf16.mxu0 0
    %321 = vmatpush1.bf16.msra.mxu0 %v302
    %322 = vmatprep.subr.bf16.mxu0 0
    %323 = vmatpush1.bf16.msra.mxu0 %v301
    %324 = vmatprep.subr.bf16.mxu0 0
    %325 = vmatpush2.bf16.msra.mxu0 0
    %326 = vmatprep.subr.bf16.mxu0 0
    %327 = vmatpush2.bf16.msra.mxu0 0
    %328 = vmatprep.subr.bf16.mxu0 0
    %329 = vmatpush2.bf16.msra.mxu0 0
    %330 = vmatprep.subr.bf16.mxu0 0
    %331 = vmatpush2.bf16.msra.mxu0 0
    %332 = vmatprep.subr.bf16.mxu0 0
    %333 = vmatpush2.bf16.msra.mxu0 0
    %334 = vmatprep.subr.bf16.mxu0 0
    %335 = vmatpush2.bf16.msra.mxu0 0
    %336 = vmatprep.subr.bf16.mxu0 0
    %337 = vmatpush2.bf16.msra.mxu0 0
    %338 = vmatprep.subr.bf16.mxu0 0
    %339 = vmatpush2.bf16.msra.mxu0 0
    %340 = vmatprep.mubr.bf16.mxu0 0
    %341 = vmatmul.mubr.bf16.gmra.mxu0 %v306
    %v342 = vpop.f32.mrf.mxu0
    %v343 = vadd.f32 %v292, %v342
    %v344 = vpop.f32.mrf.mxu0
    %v345 = vpop.f32.mrf.mxu0
    %v346 = vpop.f32.mrf.mxu0
    %347 = vdwg.mxu0
    %v348 = vmax.f32 %v343, 0.0
    %v349 = vpack.c.bf16 %v348, %v348
    %s350 = scalar_lea.vmem [#allocation2], 48
    %v351 = vld [vmem:[%s350] sm:$0xf]
    %v352 = vld [vmem:[%s350 + $0x4] sm:$0xf]
    %v353 = vld [vmem:[%s350 + $0x8] sm:$0xf]
    %v354 = vld [vmem:[%s350 + $0xc] sm:$0xf]
    %v355 = vld [vmem:[%s4 + $0x4] sm:$0x1]
    %v356 = vlaneseq
    %v357 = vshrl.u32 %v356, 7
    %v358 = vsub.s32 0, %v357
    %v359 = vrot.slane %v355, %v358
    %v364 = vunpack.c.l.b16 %v351
    %v365 = vunpack.c.l.b16 %v352
    %v366 = vunpack.c.l.b16 %v353
    %v367 = vunpack.c.l.b16 %v354
    %v368 = vpack.c.b16 %v365, %v364
    %v369 = vpack.c.b16 %v367, %v366
    %v373 = vsel %vm170, %v349, 0
    %375 = vmatprep.subr.bf16.mxu0 0
    %376 = vmatpush1.bf16.msra.mxu0 0
    %377 = vmatprep.subr.bf16.mxu0 0
    %378 = vmatpush1.bf16.msra.mxu0 0
    %379 = vmatprep.subr.bf16.mxu0 0
    %380 = vmatpush1.bf16.msra.mxu0 0
    %381 = vmatprep.subr.bf16.mxu0 0
    %382 = vmatpush1.bf16.msra.mxu0 0
    %383 = vmatprep.subr.bf16.mxu0 0
    %384 = vmatpush1.bf16.msra.mxu0 0
    %385 = vmatprep.subr.bf16.mxu0 0
    %386 = vmatpush1.bf16.msra.mxu0 0
    %387 = vmatprep.subr.bf16.mxu0 0
    %388 = vmatpush1.bf16.msra.mxu0 %v369
    %389 = vmatprep.subr.bf16.mxu0 0
    %390 = vmatpush1.bf16.msra.mxu0 %v368
    %391 = vmatprep.subr.bf16.mxu0 0
    %392 = vmatpush2.bf16.msra.mxu0 0
    %393 = vmatprep.subr.bf16.mxu0 0
    %394 = vmatpush2.bf16.msra.mxu0 0
    %395 = vmatprep.subr.bf16.mxu0 0
    %396 = vmatpush2.bf16.msra.mxu0 0
    %397 = vmatprep.subr.bf16.mxu0 0
    %398 = vmatpush2.bf16.msra.mxu0 0
    %399 = vmatprep.subr.bf16.mxu0 0
    %400 = vmatpush2.bf16.msra.mxu0 0
    %401 = vmatprep.subr.bf16.mxu0 0
    %402 = vmatpush2.bf16.msra.mxu0 0
    %403 = vmatprep.subr.bf16.mxu0 0
    %404 = vmatpush2.bf16.msra.mxu0 0
    %405 = vmatprep.subr.bf16.mxu0 0
    %406 = vmatpush2.bf16.msra.mxu0 0
    %407 = vmatprep.mubr.bf16.mxu0 0
    %408 = vmatmul.mubr.bf16.gmra.mxu0 %v373
    %v409 = vpop.f32.mrf.mxu0
    %v410 = vadd.f32 %v359, %v409
    %v411 = vpop.f32.mrf.mxu0
    %v412 = vpop.f32.mrf.mxu0
    %v413 = vpop.f32.mrf.mxu0
    %414 = vdwg.mxu0
    %v415 = vmax.f32 %v410, 0.0
    %v416 = vpack.c.bf16 %v415, %v415
    %s417 = scalar_lea.vmem [#allocation2], 64
    %v418 = vld [vmem:[%s417] sm:$0xf]
    %v419 = vld [vmem:[%s417 + $0x4] sm:$0xf]
    %v420 = vld [vmem:[%s417 + $0x8] sm:$0xf]
    %v421 = vld [vmem:[%s417 + $0xc] sm:$0xf]
    %v422 = vld [vmem:[%s4 + $0x5] sm:$0x1]
    %v423 = vlaneseq
    %v424 = vshrl.u32 %v423, 7
    %v425 = vsub.s32 0, %v424
    %v426 = vrot.slane %v422, %v425
    %v431 = vunpack.c.l.b16 %v418
    %v432 = vunpack.c.l.b16 %v419
    %v433 = vunpack.c.l.b16 %v420
    %v434 = vunpack.c.l.b16 %v421
    %v435 = vpack.c.b16 %v432, %v431
    %v436 = vpack.c.b16 %v434, %v433
    %v440 = vsel %vm170, %v416, 0
    %442 = vmatprep.subr.bf16.mxu0 0
    %443 = vmatpush1.bf16.msra.mxu0 0
    %444 = vmatprep.subr.bf16.mxu0 0
    %445 = vmatpush1.bf16.msra.mxu0 0
    %446 = vmatprep.subr.bf16.mxu0 0
    %447 = vmatpush1.bf16.msra.mxu0 0
    %448 = vmatprep.subr.bf16.mxu0 0
    %449 = vmatpush1.bf16.msra.mxu0 0
    %450 = vmatprep.subr.bf16.mxu0 0
    %451 = vmatpush1.bf16.msra.mxu0 0
    %452 = vmatprep.subr.bf16.mxu0 0
    %453 = vmatpush1.bf16.msra.mxu0 0
    %454 = vmatprep.subr.bf16.mxu0 0
    %455 = vmatpush1.bf16.msra.mxu0 %v436
    %456 = vmatprep.subr.bf16.mxu0 0
    %457 = vmatpush1.bf16.msra.mxu0 %v435
    %458 = vmatprep.subr.bf16.mxu0 0
    %459 = vmatpush2.bf16.msra.mxu0 0
    %460 = vmatprep.subr.bf16.mxu0 0
    %461 = vmatpush2.bf16.msra.mxu0 0
    %462 = vmatprep.subr.bf16.mxu0 0
    %463 = vmatpush2.bf16.msra.mxu0 0
    %464 = vmatprep.subr.bf16.mxu0 0
    %465 = vmatpush2.bf16.msra.mxu0 0
    %466 = vmatprep.subr.bf16.mxu0 0
    %467 = vmatpush2.bf16.msra.mxu0 0
    %468 = vmatprep.subr.bf16.mxu0 0
    %469 = vmatpush2.bf16.msra.mxu0 0
    %470 = vmatprep.subr.bf16.mxu0 0
    %471 = vmatpush2.bf16.msra.mxu0 0
    %472 = vmatprep.subr.bf16.mxu0 0
    %473 = vmatpush2.bf16.msra.mxu0 0
    %474 = vmatprep.mubr.bf16.mxu0 0
    %475 = vmatmul.mubr.bf16.gmra.mxu0 %v440
    %v476 = vpop.f32.mrf.mxu0
    %v477 = vadd.f32 %v426, %v476
    %v478 = vpop.f32.mrf.mxu0
    %v479 = vpop.f32.mrf.mxu0
    %v480 = vpop.f32.mrf.mxu0
    %481 = vdwg.mxu0
    %v482 = vmax.f32 %v477, 0.0
    %v483 = vpack.c.bf16 %v482, %v482
    %s484 = scalar_lea.vmem [#allocation2], 80
    %v485 = vld [vmem:[%s484] sm:$0xf]
    %v486 = vld [vmem:[%s484 + $0x4] sm:$0xf]
    %v487 = vld [vmem:[%s484 + $0x8] sm:$0xf]
    %v488 = vld [vmem:[%s484 + $0xc] sm:$0xf]
    %v489 = vld [vmem:[%s4 + $0x6] sm:$0x1]
    %v490 = vlaneseq
    %v491 = vshrl.u32 %v490, 7
    %v492 = vsub.s32 0, %v491
    %v493 = vrot.slane %v489, %v492
    %v498 = vunpack.c.l.b16 %v485
    %v499 = vunpack.c.l.b16 %v486
    %v500 = vunpack.c.l.b16 %v487
    %v501 = vunpack.c.l.b16 %v488
    %v502 = vpack.c.b16 %v499, %v498
    %v503 = vpack.c.b16 %v501, %v500
    %v507 = vsel %vm170, %v483, 0
    %509 = vmatprep.subr.bf16.mxu0 0
    %510 = vmatpush1.bf16.msra.mxu0 0
    %511 = vmatprep.subr.bf16.mxu0 0
    %512 = vmatpush1.bf16.msra.mxu0 0
    %513 = vmatprep.subr.bf16.mxu0 0
    %514 = vmatpush1.bf16.msra.mxu0 0
    %515 = vmatprep.subr.bf16.mxu0 0
    %516 = vmatpush1.bf16.msra.mxu0 0
    %517 = vmatprep.subr.bf16.mxu0 0
    %518 = vmatpush1.bf16.msra.mxu0 0
    %519 = vmatprep.subr.bf16.mxu0 0
    %520 = vmatpush1.bf16.msra.mxu0 0
    %521 = vmatprep.subr.bf16.mxu0 0
    %522 = vmatpush1.bf16.msra.mxu0 %v503
    %523 = vmatprep.subr.bf16.mxu0 0
    %524 = vmatpush1.bf16.msra.mxu0 %v502
    %525 = vmatprep.subr.bf16.mxu0 0
    %526 = vmatpush2.bf16.msra.mxu0 0
    %527 = vmatprep.subr.bf16.mxu0 0
    %528 = vmatpush2.bf16.msra.mxu0 0
    %529 = vmatprep.subr.bf16.mxu0 0
    %530 = vmatpush2.bf16.msra.mxu0 0
    %531 = vmatprep.subr.bf16.mxu0 0
    %532 = vmatpush2.bf16.msra.mxu0 0
    %533 = vmatprep.subr.bf16.mxu0 0
    %534 = vmatpush2.bf16.msra.mxu0 0
    %535 = vmatprep.subr.bf16.mxu0 0
    %536 = vmatpush2.bf16.msra.mxu0 0
    %537 = vmatprep.subr.bf16.mxu0 0
    %538 = vmatpush2.bf16.msra.mxu0 0
    %539 = vmatprep.subr.bf16.mxu0 0
    %540 = vmatpush2.bf16.msra.mxu0 0
    %541 = vmatprep.mubr.bf16.mxu0 0
    %542 = vmatmul.mubr.bf16.gmra.mxu0 %v507
    %v543 = vpop.f32.mrf.mxu0
    %v544 = vadd.f32 %v493, %v543
    %v545 = vpop.f32.mrf.mxu0
    %v546 = vpop.f32.mrf.mxu0
    %v547 = vpop.f32.mrf.mxu0
    %548 = vdwg.mxu0
    %v549 = vmax.f32 %v544, 0.0
    %v550 = vpack.c.bf16 %v549, %v549
    %s551 = scalar_lea.vmem [#allocation2], 96
    %v552 = vld [vmem:[%s551] sm:$0xf]
    %v553 = vld [vmem:[%s551 + $0x4] sm:$0xf]
    %v554 = vld [vmem:[%s551 + $0x8] sm:$0xf]
    %v555 = vld [vmem:[%s551 + $0xc] sm:$0xf]
    %v556 = vld [vmem:[%s4 + $0x7] sm:$0x1]
    %v557 = vlaneseq
    %v558 = vshrl.u32 %v557, 7
    %v559 = vsub.s32 0, %v558
    %v560 = vrot.slane %v556, %v559
    %v565 = vunpack.c.l.b16 %v552
    %v566 = vunpack.c.l.b16 %v553
    %v567 = vunpack.c.l.b16 %v554
    %v568 = vunpack.c.l.b16 %v555
    %v569 = vpack.c.b16 %v566, %v565
    %v570 = vpack.c.b16 %v568, %v567
    %v574 = vsel %vm170, %v550, 0
    %576 = vmatprep.subr.bf16.mxu0 0
    %577 = vmatpush1.bf16.msra.mxu0 0
    %578 = vmatprep.subr.bf16.mxu0 0
    %579 = vmatpush1.bf16.msra.mxu0 0
    %580 = vmatprep.subr.bf16.mxu0 0
    %581 = vmatpush1.bf16.msra.mxu0 0
    %582 = vmatprep.subr.bf16.mxu0 0
    %583 = vmatpush1.bf16.msra.mxu0 0
    %584 = vmatprep.subr.bf16.mxu0 0
    %585 = vmatpush1.bf16.msra.mxu0 0
    %586 = vmatprep.subr.bf16.mxu0 0
    %587 = vmatpush1.bf16.msra.mxu0 0
    %588 = vmatprep.subr.bf16.mxu0 0
    %589 = vmatpush1.bf16.msra.mxu0 %v570
    %590 = vmatprep.subr.bf16.mxu0 0
    %591 = vmatpush1.bf16.msra.mxu0 %v569
    %592 = vmatprep.subr.bf16.mxu0 0
    %593 = vmatpush2.bf16.msra.mxu0 0
    %594 = vmatprep.subr.bf16.mxu0 0
    %595 = vmatpush2.bf16.msra.mxu0 0
    %596 = vmatprep.subr.bf16.mxu0 0
    %597 = vmatpush2.bf16.msra.mxu0 0
    %598 = vmatprep.subr.bf16.mxu0 0
    %599 = vmatpush2.bf16.msra.mxu0 0
    %600 = vmatprep.subr.bf16.mxu0 0
    %601 = vmatpush2.bf16.msra.mxu0 0
    %602 = vmatprep.subr.bf16.mxu0 0
    %603 = vmatpush2.bf16.msra.mxu0 0
    %604 = vmatprep.subr.bf16.mxu0 0
    %605 = vmatpush2.bf16.msra.mxu0 0
    %606 = vmatprep.subr.bf16.mxu0 0
    %607 = vmatpush2.bf16.msra.mxu0 0
    %608 = vmatprep.mubr.bf16.mxu0 0
    %609 = vmatmul.mubr.bf16.gmra.mxu0 %v574
    %v610 = vpop.f32.mrf.mxu0
    %v611 = vadd.f32 %v560, %v610
    %v612 = vpop.f32.mrf.mxu0
    %v613 = vpop.f32.mrf.mxu0
    %v614 = vpop.f32.mrf.mxu0
    %615 = vdwg.mxu0
    %v616 = vmax.f32 %v611, 0.0
    %v617 = vpack.c.bf16 %v616, %v616
    %s618 = scalar_lea.vmem [#allocation2], 112
    %v619 = vld [vmem:[%s618] sm:$0xf]
    %v620 = vld [vmem:[%s618 + $0x4] sm:$0xf]
    %v621 = vld [vmem:[%s618 + $0x8] sm:$0xf]
    %v622 = vld [vmem:[%s618 + $0xc] sm:$0xf]
    %v623 = vld [vmem:[%s4 + $0x8] sm:$0x1]
    %v624 = vlaneseq
    %v625 = vshrl.u32 %v624, 7
    %v626 = vsub.s32 0, %v625
    %v627 = vrot.slane %v623, %v626
    %v632 = vunpack.c.l.b16 %v619
    %v633 = vunpack.c.l.b16 %v620
    %v634 = vunpack.c.l.b16 %v621
    %v635 = vunpack.c.l.b16 %v622
    %v636 = vpack.c.b16 %v633, %v632
    %v637 = vpack.c.b16 %v635, %v634
    %v641 = vsel %vm170, %v617, 0
    %643 = vmatprep.subr.bf16.mxu0 0
    %644 = vmatpush1.bf16.msra.mxu0 0
    %645 = vmatprep.subr.bf16.mxu0 0
    %646 = vmatpush1.bf16.msra.mxu0 0
    %647 = vmatprep.subr.bf16.mxu0 0
    %648 = vmatpush1.bf16.msra.mxu0 0
    %649 = vmatprep.subr.bf16.mxu0 0
    %650 = vmatpush1.bf16.msra.mxu0 0
    %651 = vmatprep.subr.bf16.mxu0 0
    %652 = vmatpush1.bf16.msra.mxu0 0
    %653 = vmatprep.subr.bf16.mxu0 0
    %654 = vmatpush1.bf16.msra.mxu0 0
    %655 = vmatprep.subr.bf16.mxu0 0
    %656 = vmatpush1.bf16.msra.mxu0 %v637
    %657 = vmatprep.subr.bf16.mxu0 0
    %658 = vmatpush1.bf16.msra.mxu0 %v636
    %659 = vmatprep.subr.bf16.mxu0 0
    %660 = vmatpush2.bf16.msra.mxu0 0
    %661 = vmatprep.subr.bf16.mxu0 0
    %662 = vmatpush2.bf16.msra.mxu0 0
    %663 = vmatprep.subr.bf16.mxu0 0
    %664 = vmatpush2.bf16.msra.mxu0 0
    %665 = vmatprep.subr.bf16.mxu0 0
    %666 = vmatpush2.bf16.msra.mxu0 0
    %667 = vmatprep.subr.bf16.mxu0 0
    %668 = vmatpush2.bf16.msra.mxu0 0
    %669 = vmatprep.subr.bf16.mxu0 0
    %670 = vmatpush2.bf16.msra.mxu0 0
    %671 = vmatprep.subr.bf16.mxu0 0
    %672 = vmatpush2.bf16.msra.mxu0 0
    %673 = vmatprep.subr.bf16.mxu0 0
    %674 = vmatpush2.bf16.msra.mxu0 0
    %675 = vmatprep.mubr.bf16.mxu0 0
    %676 = vmatmul.mubr.bf16.gmra.mxu0 %v641
    %v677 = vpop.f32.mrf.mxu0
    %v678 = vadd.f32 %v627, %v677
    %v679 = vpop.f32.mrf.mxu0
    %v680 = vpop.f32.mrf.mxu0
    %v681 = vpop.f32.mrf.mxu0
    %682 = vdwg.mxu0
    %v683 = vmax.f32 %v678, 0.0
    %v684 = vpack.c.bf16 %v683, %v683
    %v685 = vld [vmem:[%s3] sm:$0xf]
    %v686 = vld [vmem:[%s3 + $0x4] sm:$0xf]
    %v687 = vld [vmem:[%s3 + $0x8] sm:$0xf]
    %v688 = vld [vmem:[%s3 + $0xc] sm:$0xf]
    %v689 = vld [vmem:[%s4 + $0x9] sm:$0x1]
    %v690 = vlaneseq
    %v691 = vshrl.u32 %v690, 7
    %v692 = vsub.s32 0, %v691
    %v693 = vrot.slane %v689, %v692
    %v698 = vunpack.c.l.b16 %v685
    %v699 = vunpack.c.l.b16 %v686
    %v700 = vunpack.c.l.b16 %v687
    %v701 = vunpack.c.l.b16 %v688
    %v702 = vpack.c.b16 %v699, %v698
    %v703 = vpack.c.b16 %v701, %v700
    %v707 = vsel %vm170, %v684, 0
    %709 = vmatprep.subr.bf16.mxu0 0
    %710 = vmatpush1.bf16.msra.mxu0 0
    %711 = vmatprep.subr.bf16.mxu0 0
    %712 = vmatpush1.bf16.msra.mxu0 0
    %713 = vmatprep.subr.bf16.mxu0 0
    %714 = vmatpush1.bf16.msra.mxu0 0
    %715 = vmatprep.subr.bf16.mxu0 0
    %716 = vmatpush1.bf16.msra.mxu0 0
    %717 = vmatprep.subr.bf16.mxu0 0
    %718 = vmatpush1.bf16.msra.mxu0 0
    %719 = vmatprep.subr.bf16.mxu0 0
    %720 = vmatpush1.bf16.msra.mxu0 0
    %721 = vmatprep.subr.bf16.mxu0 0
    %722 = vmatpush1.bf16.msra.mxu0 %v703
    %723 = vmatprep.subr.bf16.mxu0 0
    %724 = vmatpush1.bf16.msra.mxu0 %v702
    %725 = vmatprep.subr.bf16.mxu0 0
    %726 = vmatpush2.bf16.msra.mxu0 0
    %727 = vmatprep.subr.bf16.mxu0 0
    %728 = vmatpush2.bf16.msra.mxu0 0
    %729 = vmatprep.subr.bf16.mxu0 0
    %730 = vmatpush2.bf16.msra.mxu0 0
    %731 = vmatprep.subr.bf16.mxu0 0
    %732 = vmatpush2.bf16.msra.mxu0 0
    %733 = vmatprep.subr.bf16.mxu0 0
    %734 = vmatpush2.bf16.msra.mxu0 0
    %735 = vmatprep.subr.bf16.mxu0 0
    %736 = vmatpush2.bf16.msra.mxu0 0
    %737 = vmatprep.subr.bf16.mxu0 0
    %738 = vmatpush2.bf16.msra.mxu0 0
    %739 = vmatprep.subr.bf16.mxu0 0
    %740 = vmatpush2.bf16.msra.mxu0 0
    %741 = vmatprep.mubr.bf16.mxu0 0
    %742 = vmatmul.mubr.bf16.gmra.mxu0 %v707
    %v743 = vpop.f32.mrf.mxu0
    %v744 = vadd.f32 %v693, %v743
    %v745 = vpop.f32.mrf.mxu0
    %v746 = vpop.f32.mrf.mxu0
    %v747 = vpop.f32.mrf.mxu0
    %748 = vdwg.mxu0
    %749 = vst [vmem:[#allocation5] sm:$0xff] %v744
    // Predicated region
    $region26: #{tpu_custom_call.1} parent=1 // pred_check
      _
    $region27: #{tpu_custom_call.1} parent=1 // pred_check_branch
      %751 = sbr.rel (0) target = $region29
    $region28: #{tpu_custom_call.1} parent=1 // pred_region
      %s753 = ssub.s32 128, 128
      %754 = vsyncadd [#allocation4], %s753
      %s756 = sshll.u32 [#allocation5], 4
      %s757 = int_to_ptr.vmem [resolvable:$true] %s756
      %759 = dma.vmem_to_hbm [thread:$0]  %s757, 128, %s5, [#allocation4]
    $region29: #{tpu_custom_call.1} parent=1 // pred_fallthru
      _
    // Predicated region
    $region30: #{tpu_custom_call.1} parent=1 // pred_check
      _
    $region31: #{tpu_custom_call.1} parent=1 // pred_check_branch
      %761 = sbr.rel (0) target = $region33
    $region32: #{tpu_custom_call.1} parent=1 // pred_region
      %762 = dma.done [#allocation4], 128
    $region33: #{tpu_custom_call.1} parent=1 // pred_fallthru
      _
    %763 = vsyncpa [#allocation3], 1
    %764 = vsyncpa [#allocation4], 1

// kernel: tpu_custom_call.1
$region0: #{tpu_custom_call.1}
  #allocation0 [shape = 'u32[]', space=smem, size = 0x4, offset = 0x4, fixed_abs, tag = 'smem constant byte address 0x4 - core index']
  #allocation1 [shape = 'u32[144,128]{1,0:T(1,128)}', space=vmem, size = 0x12000, scoped, tag = 'internal scratch']
  %s0 = inlined_call_operand.vmem [shape: f32[8,128], index: 0, kind: input, shape index: {}]
  %s1 = inlined_call_operand.vmem [shape: bf16[128,32], index: 1, kind: input, shape index: {}]
  %s2 = inlined_call_operand.hbm [shape: bf16[8,32,32], index: 2, kind: input, shape index: {}]
  %s3 = inlined_call_operand.vmem [shape: bf16[32,128], index: 3, kind: input, shape index: {}]
  %s4 = inlined_call_operand.vmem [shape: f32[10,128], index: 4, kind: input, shape index: {}]
  %s5 = inlined_call_operand.hbm [shape: f32[8,128], index: 5, kind: output, shape index: {}]
  %s6 = sld [smem:[#allocation0]]
  $region34: #{tpu_custom_call.1} parent=0
    _
  %s8 = ssub.s32 1, %s6
  %s9 = scalar_select 0, %s8, %s6
  $region1: #{tpu_custom_call.1} parent=0
    #allocation2 [shape = 'u8[65536]{0}', space=vmem, size = 0x10000, scoped, tag = 'input window, operand 2, single buffered']
    #allocation3 [shape = 's32[1]{0}', space=sflag, size = 0x4, scoped, tag = 'scoped memory for tpu_custom_call.1']
    #allocation4 [shape = 's32[1]{0}', space=sflag, size = 0x4, scoped, tag = 'scoped memory for tpu_custom_call.1']
    #allocation5 [shape = 'u8[4096]{0}', space=vmem, size = 0x1000, scoped, tag = 'output window, operand 0, single buffered']
    %10 = vsyncpa [#allocation3], 0
    %11 = vsyncpa [#allocation4], 0
    // Predicated region
    $region2: #{tpu_custom_call.1} parent=1 // pred_check
      _
    $region3: #{tpu_custom_call.1} parent=1 // pred_check_branch
      %13 = sbr.rel (0) target = $region5
    $region4: #{tpu_custom_call.1} parent=1 // pred_region
      _
    $region5: #{tpu_custom_call.1} parent=1 // pred_fallthru
      _
    // Predicated region
    $region6: #{tpu_custom_call.1} parent=1 // pred_check
      _
    $region7: #{tpu_custom_call.1} parent=1 // pred_check_branch
      %15 = sbr.rel (0) target = $region9
    $region8: #{tpu_custom_call.1} parent=1 // pred_region
      _
    $region9: #{tpu_custom_call.1} parent=1 // pred_fallthru
      _
    // Predicated region
    $region10: #{tpu_custom_call.1} parent=1 // pred_check
      _
    $region11: #{tpu_custom_call.1} parent=1 // pred_check_branch
      %17 = sbr.rel (0) target = $region13
    $region12: #{tpu_custom_call.1} parent=1 // pred_region
      %s19 = ssub.s32 2048, 2048
      %20 = vsyncadd [#allocation3], %s19
      %s21 = sshll.u32 [#allocation2], 4
      %s22 = int_to_ptr.vmem [resolvable:$true] %s21
      %27 = dma.hbm_to_vmem [thread:$0]  %s2, 2048, %s22, [#allocation3], 64, 64, 4
    $region13: #{tpu_custom_call.1} parent=1 // pred_fallthru
      _
    // Predicated region
    $region14: #{tpu_custom_call.1} parent=1 // pred_check
      _
    $region15: #{tpu_custom_call.1} parent=1 // pred_check_branch
      %29 = sbr.rel (0) target = $region17
    $region16: #{tpu_custom_call.1} parent=1 // pred_region
      _
    $region17: #{tpu_custom_call.1} parent=1 // pred_fallthru
      _
    // Predicated region
    $region18: #{tpu_custom_call.1} parent=1 // pred_check
      _
    $region19: #{tpu_custom_call.1} parent=1 // pred_check_branch
      %31 = sbr.rel (0) target = $region21
    $region20: #{tpu_custom_call.1} parent=1 // pred_region
      _
    $region21: #{tpu_custom_call.1} parent=1 // pred_fallthru
      _
    // Predicated region
    $region22: #{tpu_custom_call.1} parent=1 // pred_check
      _
    $region23: #{tpu_custom_call.1} parent=1 // pred_check_branch
      %33 = sbr.rel (0) target = $region25
    $region24: #{tpu_custom_call.1} parent=1 // pred_region
      %34 = dma.done [#allocation3], 2048
    $region25: #{tpu_custom_call.1} parent=1 // pred_fallthru
      _
    %v36 = vld [vmem:[%s0] sm:$0xff]
    %v37 = vpack.c.bf16 %v36, %v36
    %v38 = vld [vmem:[%s1] sm:$0xf]
    %v39 = vld [vmem:[%s1 + $0x4] sm:$0xf]
    %v40 = vld [vmem:[%s1 + $0x8] sm:$0xf]
    %v41 = vld [vmem:[%s1 + $0xc] sm:$0xf]
    %v42 = vld [vmem:[%s1 + $0x10] sm:$0xf]
    %v43 = vld [vmem:[%s1 + $0x14] sm:$0xf]
    %v44 = vld [vmem:[%s1 + $0x18] sm:$0xf]
    %v45 = vld [vmem:[%s1 + $0x1c] sm:$0xf]
    %v46 = vld [vmem:[%s1 + $0x20] sm:$0xf]
    %v47 = vld [vmem:[%s1 + $0x24] sm:$0xf]
    %v48 = vld [vmem:[%s1 + $0x28] sm:$0xf]
    %v49 = vld [vmem:[%s1 + $0x2c] sm:$0xf]
    %v50 = vld [vmem:[%s1 + $0x30] sm:$0xf]
    %v51 = vld [vmem:[%s1 + $0x34] sm:$0xf]
    %v52 = vld [vmem:[%s1 + $0x38] sm:$0xf]
    %v53 = vld [vmem:[%s1 + $0x3c] sm:$0xf]
    %v54 = vld [vmem:[%s4] sm:$0x1]
    %v55 = vlaneseq
    %v56 = vshrl.u32 %v55, 7
    %v57 = vsub.s32 0, %v56
    %v58 = vrot.slane %v54, %v57
    %v75 = vunpack.c.l.b16 %v38
    %v76 = vunpack.c.l.b16 %v39
    %v77 = vunpack.c.l.b16 %v40
    %v78 = vunpack.c.l.b16 %v41
    %v79 = vunpack.c.l.b16 %v42
    %v80 = vunpack.c.l.b16 %v43
    %v81 = vunpack.c.l.b16 %v44
    %v82 = vunpack.c.l.b16 %v45
    %v83 = vunpack.c.l.b16 %v46
    %v84 = vunpack.c.l.b16 %v47
    %v85 = vunpack.c.l.b16 %v48
    %v86 = vunpack.c.l.b16 %v49
    %v87 = vunpack.c.l.b16 %v50
    %v88 = vunpack.c.l.b16 %v51
    %v89 = vunpack.c.l.b16 %v52
    %v90 = vunpack.c.l.b16 %v53
    %v91 = vpack.c.b16 %v76, %v75
    %v92 = vpack.c.b16 %v78, %v77
    %v93 = vpack.c.b16 %v80, %v79
    %v94 = vpack.c.b16 %v82, %v81
    %v95 = vpack.c.b16 %v84, %v83
    %v96 = vpack.c.b16 %v86, %v85
    %v97 = vpack.c.b16 %v88, %v87
    %v98 = vpack.c.b16 %v90, %v89
    %107 = vmatprep.subr.bf16.mxu0 0
    %108 = vmatpush1.bf16.msra.mxu0 %v98
    %109 = vmatprep.subr.bf16.mxu0 0
    %110 = vmatpush1.bf16.msra.mxu0 %v97
    %111 = vmatprep.subr.bf16.mxu0 0
    %112 = vmatpush1.bf16.msra.mxu0 %v96
    %113 = vmatprep.subr.bf16.mxu0 0
    %114 = vmatpush1.bf16.msra.mxu0 %v95
    %115 = vmatprep.subr.bf16.mxu0 0
    %116 = vmatpush1.bf16.msra.mxu0 %v94
    %117 = vmatprep.subr.bf16.mxu0 0
    %118 = vmatpush1.bf16.msra.mxu0 %v93
    %119 = vmatprep.subr.bf16.mxu0 0
    %120 = vmatpush1.bf16.msra.mxu0 %v92
    %121 = vmatprep.subr.bf16.mxu0 0
    %122 = vmatpush1.bf16.msra.mxu0 %v91
    %123 = vmatprep.subr.bf16.mxu0 0
    %124 = vmatpush2.bf16.msra.mxu0 0
    %125 = vmatprep.subr.bf16.mxu0 0
    %126 = vmatpush2.bf16.msra.mxu0 0
    %127 = vmatprep.subr.bf16.mxu0 0
    %128 = vmatpush2.bf16.msra.mxu0 0
    %129 = vmatprep.subr.bf16.mxu0 0
    %130 = vmatpush2.bf16.msra.mxu0 0
    %131 = vmatprep.subr.bf16.mxu0 0
    %132 = vmatpush2.bf16.msra.mxu0 0
    %133 = vmatprep.subr.bf16.mxu0 0
    %134 = vmatpush2.bf16.msra.mxu0 0
    %135 = vmatprep.subr.bf16.mxu0 0
    %136 = vmatpush2.bf16.msra.mxu0 0
    %137 = vmatprep.subr.bf16.mxu0 0
    %138 = vmatpush2.bf16.msra.mxu0 0
    %139 = vmatprep.mubr.bf16.mxu0 0
    %140 = vmatmul.mubr.bf16.gmra.mxu0 %v37
    %v141 = vpop.f32.mrf.mxu0
    %v142 = vadd.f32 %v58, %v141
    %v143 = vpop.f32.mrf.mxu0
    %v144 = vpop.f32.mrf.mxu0
    %v145 = vpop.f32.mrf.mxu0
    %146 = vdwg.mxu0
    %v147 = vmax.f32 %v142, 0.0
    %v148 = vpack.c.bf16 %v147, %v147
    %v149 = vld [vmem:[#allocation2] sm:$0xf]
    %v150 = vld [vmem:[#allocation2 + $0x4] sm:$0xf]
    %v151 = vld [vmem:[#allocation2 + $0x8] sm:$0xf]
    %v152 = vld [vmem:[#allocation2 + $0xc] sm:$0xf]
    %v153 = vld [vmem:[%s4 + $0x1] sm:$0x1]
    %v154 = vlaneseq
    %v155 = vshrl.u32 %v154, 7
    %v156 = vsub.s32 0, %v155
    %v157 = vrot.slane %v153, %v156
    %v162 = vunpack.c.l.b16 %v149
    %v163 = vunpack.c.l.b16 %v150
    %v164 = vunpack.c.l.b16 %v151
    %v165 = vunpack.c.l.b16 %v152
    %v166 = vpack.c.b16 %v163, %v162
    %v167 = vpack.c.b16 %v165, %v164
    %vm170 = vcmask 261120
    %v172 = vsel %vm170, %v148, 0
    %174 = vmatprep.subr.bf16.mxu0 0
    %175 = vmatpush1.bf16.msra.mxu0 0
    %176 = vmatprep.subr.bf16.mxu0 0
    %177 = vmatpush1.bf16.msra.mxu0 0
    %178 = vmatprep.subr.bf16.mxu0 0
    %179 = vmatpush1.bf16.msra.mxu0 0
    %180 = vmatprep.subr.bf16.mxu0 0
    %181 = vmatpush1.bf16.msra.mxu0 0
    %182 = vmatprep.subr.bf16.mxu0 0
    %183 = vmatpush1.bf16.msra.mxu0 0
    %184 = vmatprep.subr.bf16.mxu0 0
    %185 = vmatpush1.bf16.msra.mxu0 0
    %186 = vmatprep.subr.bf16.mxu0 0
    %187 = vmatpush1.bf16.msra.mxu0 %v167
    %188 = vmatprep.subr.bf16.mxu0 0
    %189 = vmatpush1.bf16.msra.mxu0 %v166
    %190 = vmatprep.subr.bf16.mxu0 0
    %191 = vmatpush2.bf16.msra.mxu0 0
    %192 = vmatprep.subr.bf16.mxu0 0
    %193 = vmatpush2.bf16.msra.mxu0 0
    %194 = vmatprep.subr.bf16.mxu0 0
    %195 = vmatpush2.bf16.msra.mxu0 0
    %196 = vmatprep.subr.bf16.mxu0 0
    %197 = vmatpush2.bf16.msra.mxu0 0
    %198 = vmatprep.subr.bf16.mxu0 0
    %199 = vmatpush2.bf16.msra.mxu0 0
    %200 = vmatprep.subr.bf16.mxu0 0
    %201 = vmatpush2.bf16.msra.mxu0 0
    %202 = vmatprep.subr.bf16.mxu0 0
    %203 = vmatpush2.bf16.msra.mxu0 0
    %204 = vmatprep.subr.bf16.mxu0 0
    %205 = vmatpush2.bf16.msra.mxu0 0
    %206 = vmatprep.mubr.bf16.mxu0 0
    %207 = vmatmul.mubr.bf16.gmra.mxu0 %v172
    %v208 = vpop.f32.mrf.mxu0
    %v209 = vadd.f32 %v157, %v208
    %v210 = vpop.f32.mrf.mxu0
    %v211 = vpop.f32.mrf.mxu0
    %v212 = vpop.f32.mrf.mxu0
    %213 = vdwg.mxu0
    %v214 = vmax.f32 %v209, 0.0
    %v215 = vpack.c.bf16 %v214, %v214
    %s216 = scalar_lea.vmem [#allocation2], 16
    %v217 = vld [vmem:[%s216] sm:$0xf]
    %v218 = vld [vmem:[%s216 + $0x4] sm:$0xf]
    %v219 = vld [vmem:[%s216 + $0x8] sm:$0xf]
    %v220 = vld [vmem:[%s216 + $0xc] sm:$0xf]
    %v221 = vld [vmem:[%s4 + $0x2] sm:$0x1]
    %v222 = vlaneseq
    %v223 = vshrl.u32 %v222, 7
    %v224 = vsub.s32 0, %v223
    %v225 = vrot.slane %v221, %v224
    %v230 = vunpack.c.l.b16 %v217
    %v231 = vunpack.c.l.b16 %v218
    %v232 = vunpack.c.l.b16 %v219
    %v233 = vunpack.c.l.b16 %v220
    %v234 = vpack.c.b16 %v231, %v230
    %v235 = vpack.c.b16 %v233, %v232
    %v239 = vsel %vm170, %v215, 0
    %241 = vmatprep.subr.bf16.mxu0 0
    %242 = vmatpush1.bf16.msra.mxu0 0
    %243 = vmatprep.subr.bf16.mxu0 0
    %244 = vmatpush1.bf16.msra.mxu0 0
    %245 = vmatprep.subr.bf16.mxu0 0
    %246 = vmatpush1.bf16.msra.mxu0 0
    %247 = vmatprep.subr.bf16.mxu0 0
    %248 = vmatpush1.bf16.msra.mxu0 0
    %249 = vmatprep.subr.bf16.mxu0 0
    %250 = vmatpush1.bf16.msra.mxu0 0
    %251 = vmatprep.subr.bf16.mxu0 0
    %252 = vmatpush1.bf16.msra.mxu0 0
    %253 = vmatprep.subr.bf16.mxu0 0
    %254 = vmatpush1.bf16.msra.mxu0 %v235
    %255 = vmatprep.subr.bf16.mxu0 0
    %256 = vmatpush1.bf16.msra.mxu0 %v234
    %257 = vmatprep.subr.bf16.mxu0 0
    %258 = vmatpush2.bf16.msra.mxu0 0
    %259 = vmatprep.subr.bf16.mxu0 0
    %260 = vmatpush2.bf16.msra.mxu0 0
    %261 = vmatprep.subr.bf16.mxu0 0
    %262 = vmatpush2.bf16.msra.mxu0 0
    %263 = vmatprep.subr.bf16.mxu0 0
    %264 = vmatpush2.bf16.msra.mxu0 0
    %265 = vmatprep.subr.bf16.mxu0 0
    %266 = vmatpush2.bf16.msra.mxu0 0
    %267 = vmatprep.subr.bf16.mxu0 0
    %268 = vmatpush2.bf16.msra.mxu0 0
    %269 = vmatprep.subr.bf16.mxu0 0
    %270 = vmatpush2.bf16.msra.mxu0 0
    %271 = vmatprep.subr.bf16.mxu0 0
    %272 = vmatpush2.bf16.msra.mxu0 0
    %273 = vmatprep.mubr.bf16.mxu0 0
    %274 = vmatmul.mubr.bf16.gmra.mxu0 %v239
    %v275 = vpop.f32.mrf.mxu0
    %v276 = vadd.f32 %v225, %v275
    %v277 = vpop.f32.mrf.mxu0
    %v278 = vpop.f32.mrf.mxu0
    %v279 = vpop.f32.mrf.mxu0
    %280 = vdwg.mxu0
    %v281 = vmax.f32 %v276, 0.0
    %v282 = vpack.c.bf16 %v281, %v281
    %s283 = scalar_lea.vmem [#allocation2], 32
    %v284 = vld [vmem:[%s283] sm:$0xf]
    %v285 = vld [vmem:[%s283 + $0x4] sm:$0xf]
    %v286 = vld [vmem:[%s283 + $0x8] sm:$0xf]
    %v287 = vld [vmem:[%s283 + $0xc] sm:$0xf]
    %v288 = vld [vmem:[%s4 + $0x3] sm:$0x1]
    %v289 = vlaneseq
    %v290 = vshrl.u32 %v289, 7
    %v291 = vsub.s32 0, %v290
    %v292 = vrot.slane %v288, %v291
    %v297 = vunpack.c.l.b16 %v284
    %v298 = vunpack.c.l.b16 %v285
    %v299 = vunpack.c.l.b16 %v286
    %v300 = vunpack.c.l.b16 %v287
    %v301 = vpack.c.b16 %v298, %v297
    %v302 = vpack.c.b16 %v300, %v299
    %v306 = vsel %vm170, %v282, 0
    %308 = vmatprep.subr.bf16.mxu0 0
    %309 = vmatpush1.bf16.msra.mxu0 0
    %310 = vmatprep.subr.bf16.mxu0 0
    %311 = vmatpush1.bf16.msra.mxu0 0
    %312 = vmatprep.subr.bf16.mxu0 0
    %313 = vmatpush1.bf16.msra.mxu0 0
    %314 = vmatprep.subr.bf16.mxu0 0
    %315 = vmatpush1.bf16.msra.mxu0 0
    %316 = vmatprep.subr.bf16.mxu0 0
    %317 = vmatpush1.bf16.msra.mxu0 0
    %318 = vmatprep.subr.bf16.mxu0 0
    %319 = vmatpush1.bf16.msra.mxu0 0
    %320 = vmatprep.subr.bf16.mxu0 0
    %321 = vmatpush1.bf16.msra.mxu0 %v302
    %322 = vmatprep.subr.bf16.mxu0 0
    %323 = vmatpush1.bf16.msra.mxu0 %v301
    %324 = vmatprep.subr.bf16.mxu0 0
    %325 = vmatpush2.bf16.msra.mxu0 0
    %326 = vmatprep.subr.bf16.mxu0 0
    %327 = vmatpush2.bf16.msra.mxu0 0
    %328 = vmatprep.subr.bf16.mxu0 0
    %329 = vmatpush2.bf16.msra.mxu0 0
    %330 = vmatprep.subr.bf16.mxu0 0
    %331 = vmatpush2.bf16.msra.mxu0 0
    %332 = vmatprep.subr.bf16.mxu0 0
    %333 = vmatpush2.bf16.msra.mxu0 0
    %334 = vmatprep.subr.bf16.mxu0 0
    %335 = vmatpush2.bf16.msra.mxu0 0
    %336 = vmatprep.subr.bf16.mxu0 0
    %337 = vmatpush2.bf16.msra.mxu0 0
    %338 = vmatprep.subr.bf16.mxu0 0
    %339 = vmatpush2.bf16.msra.mxu0 0
    %340 = vmatprep.mubr.bf16.mxu0 0
    %341 = vmatmul.mubr.bf16.gmra.mxu0 %v306
    %v342 = vpop.f32.mrf.mxu0
    %v343 = vadd.f32 %v292, %v342
    %v344 = vpop.f32.mrf.mxu0
    %v345 = vpop.f32.mrf.mxu0
    %v346 = vpop.f32.mrf.mxu0
    %347 = vdwg.mxu0
    %v348 = vmax.f32 %v343, 0.0
    %v349 = vpack.c.bf16 %v348, %v348
    %s350 = scalar_lea.vmem [#allocation2], 48
    %v351 = vld [vmem:[%s350] sm:$0xf]
    %v352 = vld [vmem:[%s350 + $0x4] sm:$0xf]
    %v353 = vld [vmem:[%s350 + $0x8] sm:$0xf]
    %v354 = vld [vmem:[%s350 + $0xc] sm:$0xf]
    %v355 = vld [vmem:[%s4 + $0x4] sm:$0x1]
    %v356 = vlaneseq
    %v357 = vshrl.u32 %v356, 7
    %v358 = vsub.s32 0, %v357
    %v359 = vrot.slane %v355, %v358
    %v364 = vunpack.c.l.b16 %v351
    %v365 = vunpack.c.l.b16 %v352
    %v366 = vunpack.c.l.b16 %v353
    %v367 = vunpack.c.l.b16 %v354
    %v368 = vpack.c.b16 %v365, %v364
    %v369 = vpack.c.b16 %v367, %v366
    %v373 = vsel %vm170, %v349, 0
    %375 = vmatprep.subr.bf16.mxu0 0
    %376 = vmatpush1.bf16.msra.mxu0 0
    %377 = vmatprep.subr.bf16.mxu0 0
    %378 = vmatpush1.bf16.msra.mxu0 0
    %379 = vmatprep.subr.bf16.mxu0 0
    %380 = vmatpush1.bf16.msra.mxu0 0
    %381 = vmatprep.subr.bf16.mxu0 0
    %382 = vmatpush1.bf16.msra.mxu0 0
    %383 = vmatprep.subr.bf16.mxu0 0
    %384 = vmatpush1.bf16.msra.mxu0 0
    %385 = vmatprep.subr.bf16.mxu0 0
    %386 = vmatpush1.bf16.msra.mxu0 0
    %387 = vmatprep.subr.bf16.mxu0 0
    %388 = vmatpush1.bf16.msra.mxu0 %v369
    %389 = vmatprep.subr.bf16.mxu0 0
    %390 = vmatpush1.bf16.msra.mxu0 %v368
    %391 = vmatprep.subr.bf16.mxu0 0
    %392 = vmatpush2.bf16.msra.mxu0 0
    %393 = vmatprep.subr.bf16.mxu0 0
    %394 = vmatpush2.bf16.msra.mxu0 0
    %395 = vmatprep.subr.bf16.mxu0 0
    %396 = vmatpush2.bf16.msra.mxu0 0
    %397 = vmatprep.subr.bf16.mxu0 0
    %398 = vmatpush2.bf16.msra.mxu0 0
    %399 = vmatprep.subr.bf16.mxu0 0
    %400 = vmatpush2.bf16.msra.mxu0 0
    %401 = vmatprep.subr.bf16.mxu0 0
    %402 = vmatpush2.bf16.msra.mxu0 0
    %403 = vmatprep.subr.bf16.mxu0 0
    %404 = vmatpush2.bf16.msra.mxu0 0
    %405 = vmatprep.subr.bf16.mxu0 0
    %406 = vmatpush2.bf16.msra.mxu0 0
    %407 = vmatprep.mubr.bf16.mxu0 0
    %408 = vmatmul.mubr.bf16.gmra.mxu0 %v373
    %v409 = vpop.f32.mrf.mxu0
    %v410 = vadd.f32 %v359, %v409
    %v411 = vpop.f32.mrf.mxu0
    %v412 = vpop.f32.mrf.mxu0
    %v413 = vpop.f32.mrf.mxu0
    %414 = vdwg.mxu0
    %v415 = vmax.f32 %v410, 0.0
    %v416 = vpack.c.bf16 %v415, %v415
    %s417 = scalar_lea.vmem [#allocation2], 64
    %v418 = vld [vmem:[%s417] sm:$0xf]
    %v419 = vld [vmem:[%s417 + $0x4] sm:$0xf]
    %v420 = vld [vmem:[%s417 + $0x8] sm:$0xf]
    %v421 = vld [vmem:[%s417 + $0xc] sm:$0xf]
    %v422 = vld [vmem:[%s4 + $0x5] sm:$0x1]
    %v423 = vlaneseq
    %v424 = vshrl.u32 %v423, 7
    %v425 = vsub.s32 0, %v424
    %v426 = vrot.slane %v422, %v425
    %v431 = vunpack.c.l.b16 %v418
    %v432 = vunpack.c.l.b16 %v419
    %v433 = vunpack.c.l.b16 %v420
    %v434 = vunpack.c.l.b16 %v421
    %v435 = vpack.c.b16 %v432, %v431
    %v436 = vpack.c.b16 %v434, %v433
    %v440 = vsel %vm170, %v416, 0
    %442 = vmatprep.subr.bf16.mxu0 0
    %443 = vmatpush1.bf16.msra.mxu0 0
    %444 = vmatprep.subr.bf16.mxu0 0
    %445 = vmatpush1.bf16.msra.mxu0 0
    %446 = vmatprep.subr.bf16.mxu0 0
    %447 = vmatpush1.bf16.msra.mxu0 0
    %448 = vmatprep.subr.bf16.mxu0 0
    %449 = vmatpush1.bf16.msra.mxu0 0
    %450 = vmatprep.subr.bf16.mxu0 0
    %451 = vmatpush1.bf16.msra.mxu0 0
    %452 = vmatprep.subr.bf16.mxu0 0
    %453 = vmatpush1.bf16.msra.mxu0 0
    %454 = vmatprep.subr.bf16.mxu0 0
    %455 = vmatpush1.bf16.msra.mxu0 %v436
    %456 = vmatprep.subr.bf16.mxu0 0
    %457 = vmatpush1.bf16.msra.mxu0 %v435
    %458 = vmatprep.subr.bf16.mxu0 0
    %459 = vmatpush2.bf16.msra.mxu0 0
    %460 = vmatprep.subr.bf16.mxu0 0
    %461 = vmatpush2.bf16.msra.mxu0 0
    %462 = vmatprep.subr.bf16.mxu0 0
    %463 = vmatpush2.bf16.msra.mxu0 0
    %464 = vmatprep.subr.bf16.mxu0 0
    %465 = vmatpush2.bf16.msra.mxu0 0
    %466 = vmatprep.subr.bf16.mxu0 0
    %467 = vmatpush2.bf16.msra.mxu0 0
    %468 = vmatprep.subr.bf16.mxu0 0
    %469 = vmatpush2.bf16.msra.mxu0 0
    %470 = vmatprep.subr.bf16.mxu0 0
    %471 = vmatpush2.bf16.msra.mxu0 0
    %472 = vmatprep.subr.bf16.mxu0 0
    %473 = vmatpush2.bf16.msra.mxu0 0
    %474 = vmatprep.mubr.bf16.mxu0 0
    %475 = vmatmul.mubr.bf16.gmra.mxu0 %v440
    %v476 = vpop.f32.mrf.mxu0
    %v477 = vadd.f32 %v426, %v476
    %v478 = vpop.f32.mrf.mxu0
    %v479 = vpop.f32.mrf.mxu0
    %v480 = vpop.f32.mrf.mxu0
    %481 = vdwg.mxu0
    %v482 = vmax.f32 %v477, 0.0
    %v483 = vpack.c.bf16 %v482, %v482
    %s484 = scalar_lea.vmem [#allocation2], 80
    %v485 = vld [vmem:[%s484] sm:$0xf]
    %v486 = vld [vmem:[%s484 + $0x4] sm:$0xf]
    %v487 = vld [vmem:[%s484 + $0x8] sm:$0xf]
    %v488 = vld [vmem:[%s484 + $0xc] sm:$0xf]
    %v489 = vld [vmem:[%s4 + $0x6] sm:$0x1]
    %v490 = vlaneseq
    %v491 = vshrl.u32 %v490, 7
    %v492 = vsub.s32 0, %v491
    %v493 = vrot.slane %v489, %v492
    %v498 = vunpack.c.l.b16 %v485
    %v499 = vunpack.c.l.b16 %v486
    %v500 = vunpack.c.l.b16 %v487
    %v501 = vunpack.c.l.b16 %v488
    %v502 = vpack.c.b16 %v499, %v498
    %v503 = vpack.c.b16 %v501, %v500
    %v507 = vsel %vm170, %v483, 0
    %509 = vmatprep.subr.bf16.mxu0 0
    %510 = vmatpush1.bf16.msra.mxu0 0
    %511 = vmatprep.subr.bf16.mxu0 0
    %512 = vmatpush1.bf16.msra.mxu0 0
    %513 = vmatprep.subr.bf16.mxu0 0
    %514 = vmatpush1.bf16.msra.mxu0 0
    %515 = vmatprep.subr.bf16.mxu0 0
    %516 = vmatpush1.bf16.msra.mxu0 0
    %517 = vmatprep.subr.bf16.mxu0 0
    %518 = vmatpush1.bf16.msra.mxu0 0
    %519 = vmatprep.subr.bf16.mxu0 0
    %520 = vmatpush1.bf16.msra.mxu0 0
    %521 = vmatprep.subr.bf16.mxu0 0
    %522 = vmatpush1.bf16.msra.mxu0 %v503
    %523 = vmatprep.subr.bf16.mxu0 0
    %524 = vmatpush1.bf16.msra.mxu0 %v502
    %525 = vmatprep.subr.bf16.mxu0 0
    %526 = vmatpush2.bf16.msra.mxu0 0
    %527 = vmatprep.subr.bf16.mxu0 0
    %528 = vmatpush2.bf16.msra.mxu0 0
    %529 = vmatprep.subr.bf16.mxu0 0
    %530 = vmatpush2.bf16.msra.mxu0 0
    %531 = vmatprep.subr.bf16.mxu0 0
    %532 = vmatpush2.bf16.msra.mxu0 0
    %533 = vmatprep.subr.bf16.mxu0 0
    %534 = vmatpush2.bf16.msra.mxu0 0
    %535 = vmatprep.subr.bf16.mxu0 0
    %536 = vmatpush2.bf16.msra.mxu0 0
    %537 = vmatprep.subr.bf16.mxu0 0
    %538 = vmatpush2.bf16.msra.mxu0 0
    %539 = vmatprep.subr.bf16.mxu0 0
    %540 = vmatpush2.bf16.msra.mxu0 0
    %541 = vmatprep.mubr.bf16.mxu0 0
    %542 = vmatmul.mubr.bf16.gmra.mxu0 %v507
    %v543 = vpop.f32.mrf.mxu0
    %v544 = vadd.f32 %v493, %v543
    %v545 = vpop.f32.mrf.mxu0
    %v546 = vpop.f32.mrf.mxu0
    %v547 = vpop.f32.mrf.mxu0
    %548 = vdwg.mxu0
    %v549 = vmax.f32 %v544, 0.0
    %v550 = vpack.c.bf16 %v549, %v549
    %s551 = scalar_lea.vmem [#allocation2], 96
    %v552 = vld [vmem:[%s551] sm:$0xf]
    %v553 = vld [vmem:[%s551 + $0x4] sm:$0xf]
    %v554 = vld [vmem:[%s551 + $0x8] sm:$0xf]
    %v555 = vld [vmem:[%s551 + $0xc] sm:$0xf]
    %v556 = vld [vmem:[%s4 + $0x7] sm:$0x1]
    %v557 = vlaneseq
    %v558 = vshrl.u32 %v557, 7
    %v559 = vsub.s32 0, %v558
    %v560 = vrot.slane %v556, %v559
    %v565 = vunpack.c.l.b16 %v552
    %v566 = vunpack.c.l.b16 %v553
    %v567 = vunpack.c.l.b16 %v554
    %v568 = vunpack.c.l.b16 %v555
    %v569 = vpack.c.b16 %v566, %v565
    %v570 = vpack.c.b16 %v568, %v567
    %v574 = vsel %vm170, %v550, 0
    %576 = vmatprep.subr.bf16.mxu0 0
    %577 = vmatpush1.bf16.msra.mxu0 0
    %578 = vmatprep.subr.bf16.mxu0 0
    %579 = vmatpush1.bf16.msra.mxu0 0
    %580 = vmatprep.subr.bf16.mxu0 0
    %581 = vmatpush1.bf16.msra.mxu0 0
    %582 = vmatprep.subr.bf16.mxu0 0
    %583 = vmatpush1.bf16.msra.mxu0 0
    %584 = vmatprep.subr.bf16.mxu0 0
    %585 = vmatpush1.bf16.msra.mxu0 0
    %586 = vmatprep.subr.bf16.mxu0 0
    %587 = vmatpush1.bf16.msra.mxu0 0
    %588 = vmatprep.subr.bf16.mxu0 0
    %589 = vmatpush1.bf16.msra.mxu0 %v570
    %590 = vmatprep.subr.bf16.mxu0 0
    %591 = vmatpush1.bf16.msra.mxu0 %v569
    %592 = vmatprep.subr.bf16.mxu0 0
    %593 = vmatpush2.bf16.msra.mxu0 0
    %594 = vmatprep.subr.bf16.mxu0 0
    %595 = vmatpush2.bf16.msra.mxu0 0
    %596 = vmatprep.subr.bf16.mxu0 0
    %597 = vmatpush2.bf16.msra.mxu0 0
    %598 = vmatprep.subr.bf16.mxu0 0
    %599 = vmatpush2.bf16.msra.mxu0 0
    %600 = vmatprep.subr.bf16.mxu0 0
    %601 = vmatpush2.bf16.msra.mxu0 0
    %602 = vmatprep.subr.bf16.mxu0 0
    %603 = vmatpush2.bf16.msra.mxu0 0
    %604 = vmatprep.subr.bf16.mxu0 0
    %605 = vmatpush2.bf16.msra.mxu0 0
    %606 = vmatprep.subr.bf16.mxu0 0
    %607 = vmatpush2.bf16.msra.mxu0 0
    %608 = vmatprep.mubr.bf16.mxu0 0
    %609 = vmatmul.mubr.bf16.gmra.mxu0 %v574
    %v610 = vpop.f32.mrf.mxu0
    %v611 = vadd.f32 %v560, %v610
    %v612 = vpop.f32.mrf.mxu0
    %v613 = vpop.f32.mrf.mxu0
    %v614 = vpop.f32.mrf.mxu0
    %615 = vdwg.mxu0
    %v616 = vmax.f32 %v611, 0.0
    %v617 = vpack.c.bf16 %v616, %v616
    %s618 = scalar_lea.vmem [#allocation2], 112
    %v619 = vld [vmem:[%s618] sm:$0xf]
    %v620 = vld [vmem:[%s618 + $0x4] sm:$0xf]
    %v621 = vld [vmem:[%s618 + $0x8] sm:$0xf]
    %v622 = vld [vmem:[%s618 + $0xc] sm:$0xf]
    %v623 = vld [vmem:[%s4 + $0x8] sm:$0x1]
    %v624 = vlaneseq
    %v625 = vshrl.u32 %v624, 7
    %v626 = vsub.s32 0, %v625
    %v627 = vrot.slane %v623, %v626
    %v632 = vunpack.c.l.b16 %v619
    %v633 = vunpack.c.l.b16 %v620
    %v634 = vunpack.c.l.b16 %v621
    %v635 = vunpack.c.l.b16 %v622
    %v636 = vpack.c.b16 %v633, %v632
    %v637 = vpack.c.b16 %v635, %v634
    %v641 = vsel %vm170, %v617, 0
    %643 = vmatprep.subr.bf16.mxu0 0
    %644 = vmatpush1.bf16.msra.mxu0 0
    %645 = vmatprep.subr.bf16.mxu0 0
    %646 = vmatpush1.bf16.msra.mxu0 0
    %647 = vmatprep.subr.bf16.mxu0 0
    %648 = vmatpush1.bf16.msra.mxu0 0
    %649 = vmatprep.subr.bf16.mxu0 0
    %650 = vmatpush1.bf16.msra.mxu0 0
    %651 = vmatprep.subr.bf16.mxu0 0
    %652 = vmatpush1.bf16.msra.mxu0 0
    %653 = vmatprep.subr.bf16.mxu0 0
    %654 = vmatpush1.bf16.msra.mxu0 0
    %655 = vmatprep.subr.bf16.mxu0 0
    %656 = vmatpush1.bf16.msra.mxu0 %v637
    %657 = vmatprep.subr.bf16.mxu0 0
    %658 = vmatpush1.bf16.msra.mxu0 %v636
    %659 = vmatprep.subr.bf16.mxu0 0
    %660 = vmatpush2.bf16.msra.mxu0 0
    %661 = vmatprep.subr.bf16.mxu0 0
    %662 = vmatpush2.bf16.msra.mxu0 0
    %663 = vmatprep.subr.bf16.mxu0 0
    %664 = vmatpush2.bf16.msra.mxu0 0
    %665 = vmatprep.subr.bf16.mxu0 0
    %666 = vmatpush2.bf16.msra.mxu0 0
    %667 = vmatprep.subr.bf16.mxu0 0
    %668 = vmatpush2.bf16.msra.mxu0 0
    %669 = vmatprep.subr.bf16.mxu0 0
    %670 = vmatpush2.bf16.msra.mxu0 0
    %671 = vmatprep.subr.bf16.mxu0 0
    %672 = vmatpush2.bf16.msra.mxu0 0
    %673 = vmatprep.subr.bf16.mxu0 0
    %674 = vmatpush2.bf16.msra.mxu0 0
    %675 = vmatprep.mubr.bf16.mxu0 0
    %676 = vmatmul.mubr.bf16.gmra.mxu0 %v641
    %v677 = vpop.f32.mrf.mxu0
    %v678 = vadd.f32 %v627, %v677
    %v679 = vpop.f32.mrf.mxu0
    %v680 = vpop.f32.mrf.mxu0
    %v681 = vpop.f32.mrf.mxu0
    %682 = vdwg.mxu0
    %v683 = vmax.f32 %v678, 0.0
    %v684 = vpack.c.bf16 %v683, %v683
    %v685 = vld [vmem:[%s3] sm:$0xf]
    %v686 = vld [vmem:[%s3 + $0x4] sm:$0xf]
    %v687 = vld [vmem:[%s3 + $0x8] sm:$0xf]
    %v688 = vld [vmem:[%s3 + $0xc] sm:$0xf]
    %v689 = vld [vmem:[%s4 + $0x9] sm:$0x1]
    %v690 = vlaneseq
    %v691 = vshrl.u32 %v690, 7
    %v692 = vsub.s32 0, %v691
    %v693 = vrot.slane %v689, %v692
    %v698 = vunpack.c.l.b16 %v685
    %v699 = vunpack.c.l.b16 %v686
    %v700 = vunpack.c.l.b16 %v687
    %v701 = vunpack.c.l.b16 %v688
    %v702 = vpack.c.b16 %v699, %v698
    %v703 = vpack.c.b16 %v701, %v700
    %v707 = vsel %vm170, %v684, 0
    %709 = vmatprep.subr.bf16.mxu0 0
    %710 = vmatpush1.bf16.msra.mxu0 0
    %711 = vmatprep.subr.bf16.mxu0 0
    %712 = vmatpush1.bf16.msra.mxu0 0
    %713 = vmatprep.subr.bf16.mxu0 0
    %714 = vmatpush1.bf16.msra.mxu0 0
    %715 = vmatprep.subr.bf16.mxu0 0
    %716 = vmatpush1.bf16.msra.mxu0 0
    %717 = vmatprep.subr.bf16.mxu0 0
    %718 = vmatpush1.bf16.msra.mxu0 0
    %719 = vmatprep.subr.bf16.mxu0 0
    %720 = vmatpush1.bf16.msra.mxu0 0
    %721 = vmatprep.subr.bf16.mxu0 0
    %722 = vmatpush1.bf16.msra.mxu0 %v703
    %723 = vmatprep.subr.bf16.mxu0 0
    %724 = vmatpush1.bf16.msra.mxu0 %v702
    %725 = vmatprep.subr.bf16.mxu0 0
    %726 = vmatpush2.bf16.msra.mxu0 0
    %727 = vmatprep.subr.bf16.mxu0 0
    %728 = vmatpush2.bf16.msra.mxu0 0
    %729 = vmatprep.subr.bf16.mxu0 0
    %730 = vmatpush2.bf16.msra.mxu0 0
    %731 = vmatprep.subr.bf16.mxu0 0
    %732 = vmatpush2.bf16.msra.mxu0 0
    %733 = vmatprep.subr.bf16.mxu0 0
    %734 = vmatpush2.bf16.msra.mxu0 0
    %735 = vmatprep.subr.bf16.mxu0 0
    %736 = vmatpush2.bf16.msra.mxu0 0
    %737 = vmatprep.subr.bf16.mxu0 0
    %738 = vmatpush2.bf16.msra.mxu0 0
    %739 = vmatprep.subr.bf16.mxu0 0
    %740 = vmatpush2.bf16.msra.mxu0 0
    %741 = vmatprep.mubr.bf16.mxu0 0
    %742 = vmatmul.mubr.bf16.gmra.mxu0 %v707
    %v743 = vpop.f32.mrf.mxu0
    %v744 = vadd.f32 %v693, %v743
    %v745 = vpop.f32.mrf.mxu0
    %v746 = vpop.f32.mrf.mxu0
    %v747 = vpop.f32.mrf.mxu0
    %748 = vdwg.mxu0
    %749 = vst [vmem:[#allocation5] sm:$0xff] %v744
    // Predicated region
    $region26: #{tpu_custom_call.1} parent=1 // pred_check
      _
    $region27: #{tpu_custom_call.1} parent=1 // pred_check_branch
      %751 = sbr.rel (0) target = $region29
    $region28: #{tpu_custom_call.1} parent=1 // pred_region
      %s753 = ssub.s32 128, 128
      %754 = vsyncadd [#allocation4], %s753
      %s756 = sshll.u32 [#allocation5], 4
      %s757 = int_to_ptr.vmem [resolvable:$true] %s756
      %759 = dma.vmem_to_hbm [thread:$0]  %s757, 128, %s5, [#allocation4]
    $region29: #{tpu_custom_call.1} parent=1 // pred_fallthru
      _
    // Predicated region
    $region30: #{tpu_custom_call.1} parent=1 // pred_check
      _
    $region31: #{tpu_custom_call.1} parent=1 // pred_check_branch
      %761 = sbr.rel (0) target = $region33
    $region32: #{tpu_custom_call.1} parent=1 // pred_region
      %762 = dma.done [#allocation4], 128
    $region33: #{tpu_custom_call.1} parent=1 // pred_fallthru
      _
    %763 = vsyncpa [#allocation3], 1
    %764 = vsyncpa [#allocation4], 1

</llo_original>
